<compile_context>
chip_gen: v7x
topology: tpu7x:2x2x1
jax: 0.10.0
libtpu: 0.0.40
codegen_flags: <defaults>
</compile_context>

<pallas_src>
import functools

import jax
import jax.numpy as jnp
from jax.experimental import pallas as pl
from jax.experimental.pallas import tpu as pltpu


# ---------------------------------------------------------------------------
# Fused bottleneck kernel (one batch element per grid step)
# ---------------------------------------------------------------------------

def _bottleneck_kernel(x_ref, w1_ref, w2_ref, w3_ref,
                       s1_ref, b1_ref, s2_ref, b2_ref, s3_ref, b3_ref,
                       o_ref, t1_ref, col_ref, *, H, W, plain):
    Cin = x_ref.shape[-1]
    Cmid = w1_ref.shape[-1]
    HW = H * W

    # ---- conv1 (1x1) + bn1 + relu -> zero-bordered VMEM scratch ------------
    x = x_ref[0]                                            # (H*W, Cin) f32
    y1 = jnp.dot(x.astype(jnp.bfloat16), w1_ref[...],
                 preferred_element_type=jnp.float32)
    y1 = jnp.maximum(y1 * s1_ref[...] + b1_ref[...], 0.0)

    # Zero the scratch so the 1-pixel halo is 0 (only the border strictly
    # needs it, but a full aligned fill is cheap and robust), then write the
    # conv1 output into the interior.  Padding never touches HBM.
    t1_ref[...] = jnp.zeros_like(t1_ref)
    t1_ref[1:H + 1, 1:W + 1, :] = y1.reshape(H, W, Cmid)

    # ---- conv2 (3x3, pad=1, stride=1) + bn2 + relu -------------------------
    # im2col once into VMEM (bf16), then a single deep matmul with K = 9*Cmid.
    for kh in range(3):
        for kw in range(3):
            j = (kh * 3 + kw) * Cmid
            patch = t1_ref[kh:kh + H, kw:kw + W, :].reshape(HW, Cmid)
            col_ref[:, j:j + Cmid] = patch.astype(col_ref.dtype)
    y2 = jnp.dot(col_ref[...], w2_ref[...],
                 preferred_element_type=jnp.float32)
    y2 = jnp.maximum(y2 * s2_ref[...] + b2_ref[...], 0.0)

    # ---- conv3 (1x1) + bn3 (+ identity residual) + relu --------------------
    y3 = jnp.dot(y2.astype(jnp.bfloat16), w3_ref[...],
                 preferred_element_type=jnp.float32)
    y3 = y3 * s3_ref[...] + b3_ref[...]
    if not plain:
        y3 = y3 + x                        # identity residual (Cin == Cout), f32
    o_ref[0] = jnp.maximum(y3, 0.0).astype(o_ref.dtype)


# ---------------------------------------------------------------------------
# Wrapper calling pallas_call
# ---------------------------------------------------------------------------

@functools.partial(jax.jit, static_argnames=("plain",))
def bottleneck_forward(x_nchw, params, plain=False):
    N, Cin, H, W = x_nchw.shape
    Cmid = params["w1"].shape[1]
    Cout = params["w3"].shape[1]
    if not plain:
        # downsample is None -> the identity residual requires matching widths.
        assert Cin == Cout, "identity residual needs inplanes == planes*expansion"

    # NCHW -> NHWC -> (N, H*W, C): channels land on lanes, free reshape.
    x = jnp.transpose(x_nchw, (0, 2, 3, 1)).reshape(N, H * W, Cin)

    # bf16 weights (halves weight DMA, feeds the bf16 MXU); BN stays f32.
    w1 = params["w1"].astype(jnp.bfloat16)                       # (Cin,  Cmid)
    w2 = params["w2"].reshape(9 * Cmid, Cmid).astype(jnp.bfloat16)  # (9*Cmid, Cmid)
    w3 = params["w3"].astype(jnp.bfloat16)                       # (Cmid, Cout)

    kernel = functools.partial(_bottleneck_kernel, H=H, W=W, plain=plain)

    out = pl.pallas_call(
        kernel,
        out_shape=jax.ShapeDtypeStruct((N, H * W, Cout), x_nchw.dtype),
        grid=(N,),
        in_specs=[
            pl.BlockSpec((1, H * W, Cin), lambda b: (b, 0, 0)),   # x / residual
            pl.BlockSpec((Cin, Cmid), lambda b: (0, 0)),          # w1
            pl.BlockSpec((9 * Cmid, Cmid), lambda b: (0, 0)),     # w2 (im2col)
            pl.BlockSpec((Cmid, Cout), lambda b: (0, 0)),         # w3
            pl.BlockSpec((1, Cmid), lambda b: (0, 0)),            # s1
            pl.BlockSpec((1, Cmid), lambda b: (0, 0)),            # b1
            pl.BlockSpec((1, Cmid), lambda b: (0, 0)),            # s2
            pl.BlockSpec((1, Cmid), lambda b: (0, 0)),            # b2
            pl.BlockSpec((1, Cout), lambda b: (0, 0)),            # s3
            pl.BlockSpec((1, Cout), lambda b: (0, 0)),            # b3
        ],
        out_specs=pl.BlockSpec((1, H * W, Cout), lambda b: (b, 0, 0)),
        scratch_shapes=[
            pltpu.VMEM((H + 2, W + 2, Cmid), jnp.float32),        # padded conv1 out
            pltpu.VMEM((H * W, 9 * Cmid), jnp.bfloat16),          # im2col buffer
        ],
        compiler_params=pltpu.CompilerParams(
            dimension_semantics=("parallel",),        # megacore sharding on v7x
            vmem_limit_bytes=32 * 1024 * 1024),       # explicit for v5e portability
    )(x, w1, w2, w3,
      params["s1"], params["b1"], params["s2"], params["b2"],
      params["s3"], params["b3"])

    out = out.reshape(N, H, W, Cout)
    return jnp.transpose(out, (0, 3, 1, 2))           # back to NCHW


# ---------------------------------------------------------------------------
# Parameter construction (deterministic, matches nn.Module shapes)
# ---------------------------------------------------------------------------

def _fold_bn(key, channels, eps=1e-5):
    k1, k2, k3, k4 = jax.random.split(key, 4)
    gamma = jax.random.uniform(k1, (channels,), jnp.float32, 0.5, 1.5)
    beta = 0.1 * jax.random.normal(k2, (channels,), jnp.float32)
    mean = 0.1 * jax.random.normal(k3, (channels,), jnp.float32)
    var = jax.random.uniform(k4, (channels,), jnp.float32, 0.5, 1.5)
    scale = gamma / jnp.sqrt(var + eps)
    bias = beta - mean * scale
    return scale.reshape(1, channels), bias.reshape(1, channels)


def make_bottleneck_params(key, inplanes, planes, expansion=4):
    keys = jax.random.split(key, 6)
    out_planes = planes * expansion
    params = {
        # conv weights stored channels-last: (Cin, Cout) / (3, 3, Cin, Cout)
        "w1": 0.1 * jax.random.normal(keys[0], (inplanes, planes), jnp.float32),
        "w2": 0.1 * jax.random.normal(keys[1], (3, 3, planes, planes), jnp.float32),
        "w3": 0.1 * jax.random.normal(keys[2], (planes, out_planes), jnp.float32),
    }
    params["s1"], params["b1"] = _fold_bn(keys[3], planes)
    params["s2"], params["b2"] = _fold_bn(keys[4], planes)
    params["s3"], params["b3"] = _fold_bn(keys[5], out_planes)
    return params


# ---------------------------------------------------------------------------
# Pure-JAX f32 reference (same folded-BN semantics) for a correctness check
# ---------------------------------------------------------------------------

def _reference_forward(x_nchw, params, plain=False):
    x = jnp.transpose(x_nchw, (0, 2, 3, 1))                       # NHWC
    y = jnp.einsum('nhwc,cm->nhwm', x, params["w1"])
    y = jnp.maximum(y * params["s1"] + params["b1"], 0.0)
    y = jax.lax.conv_general_dilated(
        y, params["w2"], window_strides=(1, 1), padding=((1, 1), (1, 1)),
        dimension_numbers=('NHWC', 'HWIO', 'NHWC'))
    y = jnp.maximum(y * params["s2"] + params["b2"], 0.0)
    y = jnp.einsum('nhwm,mo->nhwo', y, params["w3"])
    y = y * params["s3"] + params["b3"]
    if not plain:
        y = y + x
    y = jnp.maximum(y, 0.0)
    return jnp.transpose(y, (0, 3, 1, 2))


# ---------------------------------------------------------------------------

if __name__ == "__main__":
    key = jax.random.PRNGKey(0)
    k_x, k_p = jax.random.split(key)

    # Small ResNet-like shapes: inplanes = planes * expansion so the identity
    # residual path is valid (downsample=None).
    batch, planes, expansion, spatial = 2, 4, 4, 16
    inplanes = planes * expansion                  # 16

    x = jax.random.normal(k_x, (batch, inplanes, spatial, spatial), jnp.float32)
    params = make_bottleneck_params(k_p, inplanes, planes, expansion)

    out = bottleneck_forward(x, params, plain=False)
    jax.block_until_ready(out)

    ref = _reference_forward(x, params, plain=False)

    assert out.shape == (batch, planes * expansion, spatial, spatial)
    assert bool(jnp.all(jnp.isfinite(out)))
    max_err = float(jnp.max(jnp.abs(out - ref)))
    # bf16 matmul inputs with f32 accumulation vs an all-f32 reference.
    assert max_err < 5e-2, f"max abs error vs reference too large: {max_err}"
    print("KERNEL_OK")
</pallas_src>

<mosaic_0001>
module attributes {stable_mosaic.version = 11 : i64} {
  func.func @_bottleneck_kernel(%arg0: i32, %arg1: memref<1x256x16xf32, #tpu.memory_space<vmem>>, %arg2: memref<16x4xbf16, #tpu.memory_space<vmem>>, %arg3: memref<36x4xbf16, #tpu.memory_space<vmem>>, %arg4: memref<4x16xbf16, #tpu.memory_space<vmem>>, %arg5: memref<1x4xf32, #tpu.memory_space<vmem>>, %arg6: memref<1x4xf32, #tpu.memory_space<vmem>>, %arg7: memref<1x4xf32, #tpu.memory_space<vmem>>, %arg8: memref<1x4xf32, #tpu.memory_space<vmem>>, %arg9: memref<1x16xf32, #tpu.memory_space<vmem>>, %arg10: memref<1x16xf32, #tpu.memory_space<vmem>>, %arg11: memref<1x256x16xf32, #tpu.memory_space<vmem>>, %arg12: memref<18x18x4xf32, #tpu.memory_space<vmem>>, %arg13: memref<256x36xbf16, #tpu.memory_space<vmem>>) attributes {dimension_semantics = [#tpu.dimension_semantics<parallel>], iteration_bounds = array<i64: 2>, scalar_prefetch = 0 : i64, scratch_operands = 2 : i64, tpu.core_type = #tpu.core_type<tc>, window_params = [{transform_indices = @transform_0, window_bounds = array<i64: 1, 256, 16>}, {pipeline_mode = #tpu.pipeline_mode<synchronous>, transform_indices = @transform_1, window_bounds = array<i64: 16, 4>}, {pipeline_mode = #tpu.pipeline_mode<synchronous>, transform_indices = @transform_2, window_bounds = array<i64: 36, 4>}, {pipeline_mode = #tpu.pipeline_mode<synchronous>, transform_indices = @transform_3, window_bounds = array<i64: 4, 16>}, {pipeline_mode = #tpu.pipeline_mode<synchronous>, transform_indices = @transform_4, window_bounds = array<i64: 1, 4>}, {pipeline_mode = #tpu.pipeline_mode<synchronous>, transform_indices = @transform_5, window_bounds = array<i64: 1, 4>}, {pipeline_mode = #tpu.pipeline_mode<synchronous>, transform_indices = @transform_6, window_bounds = array<i64: 1, 4>}, {pipeline_mode = #tpu.pipeline_mode<synchronous>, transform_indices = @transform_7, window_bounds = array<i64: 1, 4>}, {pipeline_mode = #tpu.pipeline_mode<synchronous>, transform_indices = @transform_8, window_bounds = array<i64: 1, 16>}, {pipeline_mode = #tpu.pipeline_mode<synchronous>, transform_indices = @transform_9, window_bounds = array<i64: 1, 16>}, {transform_indices = @transform_10, window_bounds = array<i64: 1, 256, 16>}]} {
    %c0 = arith.constant 0 : index
    %c0_0 = arith.constant 0 : index
    %c0_1 = arith.constant 0 : index
    %0 = vector.load %arg1[%c0, %c0_0, %c0_1] : memref<1x256x16xf32, #tpu.memory_space<vmem>>, vector<1x256x16xf32>
    %1 = vector.shape_cast %0 : vector<1x256x16xf32> to vector<256x16xf32>
    %2 = arith.truncf %1 : vector<256x16xf32> to vector<256x16xbf16>
    %c0_2 = arith.constant 0 : index
    %c0_3 = arith.constant 0 : index
    %3 = vector.load %arg2[%c0_2, %c0_3] : memref<16x4xbf16, #tpu.memory_space<vmem>>, vector<16x4xbf16>
    %cst = arith.constant dense<0.000000e+00> : vector<256x4xf32>
    %4 = tpu.matmul %2, %3, %cst {dimension_numbers = #tpu.dot_dimension_numbers<[1], [0], [0], [1], [0, 0, 1, 1], [], []>} : vector<256x16xbf16>, vector<16x4xbf16>, vector<256x4xf32> -> vector<256x4xf32>
    %c0_4 = arith.constant 0 : index
    %c0_5 = arith.constant 0 : index
    %5 = vector.load %arg5[%c0_4, %c0_5] : memref<1x4xf32, #tpu.memory_space<vmem>>, vector<1x4xf32>
    %6 = vector.broadcast %5 : vector<1x4xf32> to vector<256x4xf32>
    %7 = arith.mulf %4, %6 : vector<256x4xf32>
    %c0_6 = arith.constant 0 : index
    %c0_7 = arith.constant 0 : index
    %8 = vector.load %arg6[%c0_6, %c0_7] : memref<1x4xf32, #tpu.memory_space<vmem>>, vector<1x4xf32>
    %9 = vector.broadcast %8 : vector<1x4xf32> to vector<256x4xf32>
    %10 = arith.addf %7, %9 : vector<256x4xf32>
    %cst_8 = arith.constant 0.000000e+00 : f32
    %11 = vector.broadcast %cst_8 : f32 to vector<256x4xf32>
    %12 = arith.maximumf %10, %11 : vector<256x4xf32>
    %cst_9 = arith.constant 0.000000e+00 : f32
    %13 = vector.broadcast %cst_9 : f32 to vector<18x18x4xf32>
    %c0_10 = arith.constant 0 : index
    %c0_11 = arith.constant 0 : index
    %c0_12 = arith.constant 0 : index
    %14 = vector.load %arg12[%c0_10, %c0_11, %c0_12] : memref<18x18x4xf32, #tpu.memory_space<vmem>>, vector<18x18x4xf32>
    tpu.vector_store %arg12[%c0_10, %c0_11, %c0_12], %13 {strides = array<i32>} : memref<18x18x4xf32, #tpu.memory_space<vmem>>, vector<18x18x4xf32>,
    %15 = vector.shape_cast %12 : vector<256x4xf32> to vector<16x16x4xf32>
    %c1 = arith.constant 1 : index
    %c1_13 = arith.constant 1 : index
    %c0_14 = arith.constant 0 : index
    %16 = vector.load %arg12[%c1, %c1_13, %c0_14] : memref<18x18x4xf32, #tpu.memory_space<vmem>>, vector<16x16x4xf32>
    tpu.vector_store %arg12[%c1, %c1_13, %c0_14], %15 {strides = array<i32>} : memref<18x18x4xf32, #tpu.memory_space<vmem>>, vector<16x16x4xf32>,
    %c0_15 = arith.constant 0 : index
    %c0_16 = arith.constant 0 : index
    %c0_17 = arith.constant 0 : index
    %17 = vector.load %arg12[%c0_15, %c0_16, %c0_17] : memref<18x18x4xf32, #tpu.memory_space<vmem>>, vector<16x16x4xf32>
    %18 = vector.shape_cast %17 : vector<16x16x4xf32> to vector<256x4xf32>
    %19 = arith.truncf %18 : vector<256x4xf32> to vector<256x4xbf16>
    %c0_18 = arith.constant 0 : index
    %c0_19 = arith.constant 0 : index
    %20 = vector.load %arg13[%c0_18, %c0_19] : memref<256x36xbf16, #tpu.memory_space<vmem>>, vector<256x4xbf16>
    tpu.vector_store %arg13[%c0_18, %c0_19], %19 {strides = array<i32>} : memref<256x36xbf16, #tpu.memory_space<vmem>>, vector<256x4xbf16>,
    %c0_20 = arith.constant 0 : index
    %c1_21 = arith.constant 1 : index
    %c0_22 = arith.constant 0 : index
    %21 = vector.load %arg12[%c0_20, %c1_21, %c0_22] : memref<18x18x4xf32, #tpu.memory_space<vmem>>, vector<16x16x4xf32>
    %22 = vector.shape_cast %21 : vector<16x16x4xf32> to vector<256x4xf32>
    %23 = arith.truncf %22 : vector<256x4xf32> to vector<256x4xbf16>
    %c0_23 = arith.constant 0 : index
    %c4 = arith.constant 4 : index
    %24 = vector.load %arg13[%c0_23, %c4] : memref<256x36xbf16, #tpu.memory_space<vmem>>, vector<256x4xbf16>
    tpu.vector_store %arg13[%c0_23, %c4], %23 {strides = array<i32>} : memref<256x36xbf16, #tpu.memory_space<vmem>>, vector<256x4xbf16>,
    %c0_24 = arith.constant 0 : index
    %c2 = arith.constant 2 : index
    %c0_25 = arith.constant 0 : index
    %25 = vector.load %arg12[%c0_24, %c2, %c0_25] : memref<18x18x4xf32, #tpu.memory_space<vmem>>, vector<16x16x4xf32>
    %26 = vector.shape_cast %25 : vector<16x16x4xf32> to vector<256x4xf32>
    %27 = arith.truncf %26 : vector<256x4xf32> to vector<256x4xbf16>
    %c0_26 = arith.constant 0 : index
    %c8 = arith.constant 8 : index
    %28 = vector.load %arg13[%c0_26, %c8] : memref<256x36xbf16, #tpu.memory_space<vmem>>, vector<256x4xbf16>
    tpu.vector_store %arg13[%c0_26, %c8], %27 {strides = array<i32>} : memref<256x36xbf16, #tpu.memory_space<vmem>>, vector<256x4xbf16>,
    %c1_27 = arith.constant 1 : index
    %c0_28 = arith.constant 0 : index
    %c0_29 = arith.constant 0 : index
    %29 = vector.load %arg12[%c1_27, %c0_28, %c0_29] : memref<18x18x4xf32, #tpu.memory_space<vmem>>, vector<16x16x4xf32>
    %30 = vector.shape_cast %29 : vector<16x16x4xf32> to vector<256x4xf32>
    %31 = arith.truncf %30 : vector<256x4xf32> to vector<256x4xbf16>
    %c0_30 = arith.constant 0 : index
    %c12 = arith.constant 12 : index
    %32 = vector.load %arg13[%c0_30, %c12] : memref<256x36xbf16, #tpu.memory_space<vmem>>, vector<256x4xbf16>
    tpu.vector_store %arg13[%c0_30, %c12], %31 {strides = array<i32>} : memref<256x36xbf16, #tpu.memory_space<vmem>>, vector<256x4xbf16>,
    %c1_31 = arith.constant 1 : index
    %c1_32 = arith.constant 1 : index
    %c0_33 = arith.constant 0 : index
    %33 = vector.load %arg12[%c1_31, %c1_32, %c0_33] : memref<18x18x4xf32, #tpu.memory_space<vmem>>, vector<16x16x4xf32>
    %34 = vector.shape_cast %33 : vector<16x16x4xf32> to vector<256x4xf32>
    %35 = arith.truncf %34 : vector<256x4xf32> to vector<256x4xbf16>
    %c0_34 = arith.constant 0 : index
    %c16 = arith.constant 16 : index
    %36 = vector.load %arg13[%c0_34, %c16] : memref<256x36xbf16, #tpu.memory_space<vmem>>, vector<256x4xbf16>
    tpu.vector_store %arg13[%c0_34, %c16], %35 {strides = array<i32>} : memref<256x36xbf16, #tpu.memory_space<vmem>>, vector<256x4xbf16>,
    %c1_35 = arith.constant 1 : index
    %c2_36 = arith.constant 2 : index
    %c0_37 = arith.constant 0 : index
    %37 = vector.load %arg12[%c1_35, %c2_36, %c0_37] : memref<18x18x4xf32, #tpu.memory_space<vmem>>, vector<16x16x4xf32>
    %38 = vector.shape_cast %37 : vector<16x16x4xf32> to vector<256x4xf32>
    %39 = arith.truncf %38 : vector<256x4xf32> to vector<256x4xbf16>
    %c0_38 = arith.constant 0 : index
    %c20 = arith.constant 20 : index
    %40 = vector.load %arg13[%c0_38, %c20] : memref<256x36xbf16, #tpu.memory_space<vmem>>, vector<256x4xbf16>
    tpu.vector_store %arg13[%c0_38, %c20], %39 {strides = array<i32>} : memref<256x36xbf16, #tpu.memory_space<vmem>>, vector<256x4xbf16>,
    %c2_39 = arith.constant 2 : index
    %c0_40 = arith.constant 0 : index
    %c0_41 = arith.constant 0 : index
    %41 = vector.load %arg12[%c2_39, %c0_40, %c0_41] : memref<18x18x4xf32, #tpu.memory_space<vmem>>, vector<16x16x4xf32>
    %42 = vector.shape_cast %41 : vector<16x16x4xf32> to vector<256x4xf32>
    %43 = arith.truncf %42 : vector<256x4xf32> to vector<256x4xbf16>
    %c0_42 = arith.constant 0 : index
    %c24 = arith.constant 24 : index
    %44 = vector.load %arg13[%c0_42, %c24] : memref<256x36xbf16, #tpu.memory_space<vmem>>, vector<256x4xbf16>
    tpu.vector_store %arg13[%c0_42, %c24], %43 {strides = array<i32>} : memref<256x36xbf16, #tpu.memory_space<vmem>>, vector<256x4xbf16>,
    %c2_43 = arith.constant 2 : index
    %c1_44 = arith.constant 1 : index
    %c0_45 = arith.constant 0 : index
    %45 = vector.load %arg12[%c2_43, %c1_44, %c0_45] : memref<18x18x4xf32, #tpu.memory_space<vmem>>, vector<16x16x4xf32>
    %46 = vector.shape_cast %45 : vector<16x16x4xf32> to vector<256x4xf32>
    %47 = arith.truncf %46 : vector<256x4xf32> to vector<256x4xbf16>
    %c0_46 = arith.constant 0 : index
    %c28 = arith.constant 28 : index
    %48 = vector.load %arg13[%c0_46, %c28] : memref<256x36xbf16, #tpu.memory_space<vmem>>, vector<256x4xbf16>
    tpu.vector_store %arg13[%c0_46, %c28], %47 {strides = array<i32>} : memref<256x36xbf16, #tpu.memory_space<vmem>>, vector<256x4xbf16>,
    %c2_47 = arith.constant 2 : index
    %c2_48 = arith.constant 2 : index
    %c0_49 = arith.constant 0 : index
    %49 = vector.load %arg12[%c2_47, %c2_48, %c0_49] : memref<18x18x4xf32, #tpu.memory_space<vmem>>, vector<16x16x4xf32>
    %50 = vector.shape_cast %49 : vector<16x16x4xf32> to vector<256x4xf32>
    %51 = arith.truncf %50 : vector<256x4xf32> to vector<256x4xbf16>
    %c0_50 = arith.constant 0 : index
    %c32 = arith.constant 32 : index
    %52 = vector.load %arg13[%c0_50, %c32] : memref<256x36xbf16, #tpu.memory_space<vmem>>, vector<256x4xbf16>
    tpu.vector_store %arg13[%c0_50, %c32], %51 {strides = array<i32>} : memref<256x36xbf16, #tpu.memory_space<vmem>>, vector<256x4xbf16>,
    %c0_51 = arith.constant 0 : index
    %c0_52 = arith.constant 0 : index
    %53 = vector.load %arg13[%c0_51, %c0_52] : memref<256x36xbf16, #tpu.memory_space<vmem>>, vector<256x36xbf16>
    %c0_53 = arith.constant 0 : index
    %c0_54 = arith.constant 0 : index
    %54 = vector.load %arg3[%c0_53, %c0_54] : memref<36x4xbf16, #tpu.memory_space<vmem>>, vector<36x4xbf16>
    %cst_55 = arith.constant dense<0.000000e+00> : vector<256x4xf32>
    %55 = tpu.matmul %53, %54, %cst_55 {dimension_numbers = #tpu.dot_dimension_numbers<[1], [0], [0], [1], [0, 0, 1, 1], [], []>} : vector<256x36xbf16>, vector<36x4xbf16>, vector<256x4xf32> -> vector<256x4xf32>
    %c0_56 = arith.constant 0 : index
    %c0_57 = arith.constant 0 : index
    %56 = vector.load %arg7[%c0_56, %c0_57] : memref<1x4xf32, #tpu.memory_space<vmem>>, vector<1x4xf32>
    %57 = vector.broadcast %56 : vector<1x4xf32> to vector<256x4xf32>
    %58 = arith.mulf %55, %57 : vector<256x4xf32>
    %c0_58 = arith.constant 0 : index
    %c0_59 = arith.constant 0 : index
    %59 = vector.load %arg8[%c0_58, %c0_59] : memref<1x4xf32, #tpu.memory_space<vmem>>, vector<1x4xf32>
    %60 = vector.broadcast %59 : vector<1x4xf32> to vector<256x4xf32>
    %61 = arith.addf %58, %60 : vector<256x4xf32>
    %cst_60 = arith.constant 0.000000e+00 : f32
    %62 = vector.broadcast %cst_60 : f32 to vector<256x4xf32>
    %63 = arith.maximumf %61, %62 : vector<256x4xf32>
    %64 = arith.truncf %63 : vector<256x4xf32> to vector<256x4xbf16>
    %c0_61 = arith.constant 0 : index
    %c0_62 = arith.constant 0 : index
    %65 = vector.load %arg4[%c0_61, %c0_62] : memref<4x16xbf16, #tpu.memory_space<vmem>>, vector<4x16xbf16>
    %cst_63 = arith.constant dense<0.000000e+00> : vector<256x16xf32>
    %66 = tpu.matmul %64, %65, %cst_63 {dimension_numbers = #tpu.dot_dimension_numbers<[1], [0], [0], [1], [0, 0, 1, 1], [], []>} : vector<256x4xbf16>, vector<4x16xbf16>, vector<256x16xf32> -> vector<256x16xf32>
    %c0_64 = arith.constant 0 : index
    %c0_65 = arith.constant 0 : index
    %67 = vector.load %arg9[%c0_64, %c0_65] : memref<1x16xf32, #tpu.memory_space<vmem>>, vector<1x16xf32>
    %68 = vector.broadcast %67 : vector<1x16xf32> to vector<256x16xf32>
    %69 = arith.mulf %66, %68 : vector<256x16xf32>
    %c0_66 = arith.constant 0 : index
    %c0_67 = arith.constant 0 : index
    %70 = vector.load %arg10[%c0_66, %c0_67] : memref<1x16xf32, #tpu.memory_space<vmem>>, vector<1x16xf32>
    %71 = vector.broadcast %70 : vector<1x16xf32> to vector<256x16xf32>
    %72 = arith.addf %69, %71 : vector<256x16xf32>
    %73 = arith.addf %72, %1 : vector<256x16xf32>
    %cst_68 = arith.constant 0.000000e+00 : f32
    %74 = vector.broadcast %cst_68 : f32 to vector<256x16xf32>
    %75 = arith.maximumf %73, %74 : vector<256x16xf32>
    %c0_69 = arith.constant 0 : index
    %c0_70 = arith.constant 0 : index
    %c0_71 = arith.constant 0 : index
    %76 = vector.load %arg11[%c0_69, %c0_70, %c0_71] : memref<1x256x16xf32, #tpu.memory_space<vmem>>, vector<1x256x16xf32>
    %77 = vector.shape_cast %76 : vector<1x256x16xf32> to vector<256x16xf32>
    %78 = vector.shape_cast %75 : vector<256x16xf32> to vector<1x256x16xf32>
    tpu.vector_store %arg11[%c0_69, %c0_70, %c0_71], %78 {strides = array<i32>} : memref<1x256x16xf32, #tpu.memory_space<vmem>>, vector<1x256x16xf32>,
    return
  }
  func.func @transform_0(%arg0: i32) -> (i32, i32, i32) {
    %c0_i32 = arith.constant 0 : i32
    %c0_i32_0 = arith.constant 0 : i32
    %c0_i32_1 = arith.constant 0 : i32
    return %arg0, %c0_i32, %c0_i32_0 : i32, i32, i32
  }
  func.func @transform_1(%arg0: i32) -> (i32, i32) {
    %c0_i32 = arith.constant 0 : i32
    %c0_i32_0 = arith.constant 0 : i32
    %c0_i32_1 = arith.constant 0 : i32
    return %c0_i32, %c0_i32_0 : i32, i32
  }
  func.func @transform_2(%arg0: i32) -> (i32, i32) {
    %c0_i32 = arith.constant 0 : i32
    %c0_i32_0 = arith.constant 0 : i32
    %c0_i32_1 = arith.constant 0 : i32
    return %c0_i32, %c0_i32_0 : i32, i32
  }
  func.func @transform_3(%arg0: i32) -> (i32, i32) {
    %c0_i32 = arith.constant 0 : i32
    %c0_i32_0 = arith.constant 0 : i32
    %c0_i32_1 = arith.constant 0 : i32
    return %c0_i32, %c0_i32_0 : i32, i32
  }
  func.func @transform_4(%arg0: i32) -> (i32, i32) {
    %c0_i32 = arith.constant 0 : i32
    %c0_i32_0 = arith.constant 0 : i32
    %c0_i32_1 = arith.constant 0 : i32
    return %c0_i32, %c0_i32_0 : i32, i32
  }
  func.func @transform_5(%arg0: i32) -> (i32, i32) {
    %c0_i32 = arith.constant 0 : i32
    %c0_i32_0 = arith.constant 0 : i32
    %c0_i32_1 = arith.constant 0 : i32
    return %c0_i32, %c0_i32_0 : i32, i32
  }
  func.func @transform_6(%arg0: i32) -> (i32, i32) {
    %c0_i32 = arith.constant 0 : i32
    %c0_i32_0 = arith.constant 0 : i32
    %c0_i32_1 = arith.constant 0 : i32
    return %c0_i32, %c0_i32_0 : i32, i32
  }
  func.func @transform_7(%arg0: i32) -> (i32, i32) {
    %c0_i32 = arith.constant 0 : i32
    %c0_i32_0 = arith.constant 0 : i32
    %c0_i32_1 = arith.constant 0 : i32
    return %c0_i32, %c0_i32_0 : i32, i32
  }
  func.func @transform_8(%arg0: i32) -> (i32, i32) {
    %c0_i32 = arith.constant 0 : i32
    %c0_i32_0 = arith.constant 0 : i32
    %c0_i32_1 = arith.constant 0 : i32
    return %c0_i32, %c0_i32_0 : i32, i32
  }
  func.func @transform_9(%arg0: i32) -> (i32, i32) {
    %c0_i32 = arith.constant 0 : i32
    %c0_i32_0 = arith.constant 0 : i32
    %c0_i32_1 = arith.constant 0 : i32
    return %c0_i32, %c0_i32_0 : i32, i32
  }
  func.func @transform_10(%arg0: i32) -> (i32, i32, i32) {
    %c0_i32 = arith.constant 0 : i32
    %c0_i32_0 = arith.constant 0 : i32
    %c0_i32_1 = arith.constant 0 : i32
    return %arg0, %c0_i32, %c0_i32_0 : i32, i32, i32
  }
}

</mosaic_0001>

<llo_original>
// kernel: bottleneck_forward.1
$region0: #{bottleneck_forward.1}
  #allocation0 [shape = 'u32[]', space=smem, size = 0x4, offset = 0x4, fixed_abs, tag = 'smem constant byte address 0x4 - core index']
  #allocation1 [shape = 'u32[144,128]{1,0:T(1,128)}', space=vmem, size = 0x12000, scoped, tag = 'internal scratch']
  #allocation2 [shape = 'f32[18,18,4]{2,1,0:T(8,128)}', space=vmem, size = 0x36000, scoped, tag = 'scratch operand']
  #allocation3 [shape = 'bf16[256,36]{1,0:T(16,128)(2,1)}', space=vmem, size = 0x10000, scoped, tag = 'scratch operand']
  %s0 = inlined_call_operand.vmem [shape: f32[2,256,16], index: 0, kind: input, shape index: {}]
  %s1 = inlined_call_operand.vmem [shape: bf16[16,4], index: 1, kind: input, shape index: {}]
  %s2 = inlined_call_operand.vmem [shape: bf16[36,4], index: 2, kind: input, shape index: {}]
  %s3 = inlined_call_operand.vmem [shape: bf16[4,16], index: 3, kind: input, shape index: {}]
  %s4 = inlined_call_operand.vmem [shape: f32[1,4], index: 4, kind: input, shape index: {}]
  %s5 = inlined_call_operand.vmem [shape: f32[1,4], index: 5, kind: input, shape index: {}]
  %s6 = inlined_call_operand.vmem [shape: f32[1,4], index: 6, kind: input, shape index: {}]
  %s7 = inlined_call_operand.vmem [shape: f32[1,4], index: 7, kind: input, shape index: {}]
  %s8 = inlined_call_operand.vmem [shape: f32[1,16], index: 8, kind: input, shape index: {}]
  %s9 = inlined_call_operand.vmem [shape: f32[1,16], index: 9, kind: input, shape index: {}]
  %s10 = inlined_call_operand.vmem [shape: f32[2,256,16], index: 10, kind: output, shape index: {}]
  %s11 = sld [smem:[#allocation0]]
  $region73: #{bottleneck_forward.1} parent=0
    _
  %s13 = ssub.s32 1, %s11
  %s14 = scalar_select 0, %s13, %s11
  loop: start=0, step=1, limit=4
  $region2: #{bottleneck_forward.1} parent=0 // loop_pre_header
    _
  $region3: #{bottleneck_forward.1} parent=0 // loop_header
    %s16 = sphi 0, %s20
    %p17 = scmp.ge.s32.totalorder %s16, 4
    %s26 = sphi 0, %s28
    %s29 = sphi 0, %s26
    %s30 = sphi 0, %s29
    %s46 = sphi 0, %s30
    %s50 = sphi 0, %s50
    %s52 = sphi 0, %s50
    %s53 = sphi 0, %s52
    %s67 = sphi 0, %s53
    %s71 = sphi 0, %s71
    %s73 = sphi 0, %s71
    %s74 = sphi 0, %s73
    %s88 = sphi 0, %s74
    %s92 = sphi 0, %s92
    %s94 = sphi 0, %s92
    %s95 = sphi 0, %s94
    %s109 = sphi 0, %s95
    %s113 = sphi 0, %s113
    %s115 = sphi 0, %s113
    %s116 = sphi 0, %s115
    %s130 = sphi 0, %s116
    %s134 = sphi 0, %s134
    %s136 = sphi 0, %s134
    %s137 = sphi 0, %s136
    %s151 = sphi 0, %s137
    %s155 = sphi 0, %s155
    %s157 = sphi 0, %s155
    %s158 = sphi 0, %s157
    %s172 = sphi 0, %s158
    %s176 = sphi 0, %s176
    %s178 = sphi 0, %s176
    %s179 = sphi 0, %s178
    %s193 = sphi 0, %s179
    %s197 = sphi 0, %s197
    %s199 = sphi 0, %s197
    %s200 = sphi 0, %s199
    %s214 = sphi 0, %s200
    %s218 = sphi 0, %s218
    %s220 = sphi 0, %s218
    %s221 = sphi 0, %s220
    %s235 = sphi 0, %s221
    %s241 = sphi 0, %s243
    %s244 = sphi 0, %s241
    %s245 = sphi 0, %s244
    %s261 = sphi 0, %s245
  $region4: #{bottleneck_forward.1} parent=0 // loop_header_branch
    %19 = sbr.rel (%p17) target = $region8
  $region5: #{bottleneck_forward.1} parent=0 // loop_body
    %s21 = ssub.s32 %s16, 1
    %s22 = ssub.s32 %s16, 2
    %s23 = sadd.s32 %s16, 1
    %s24 = ssub.s32 %s16, %s23
    %p25 = scmp.eq.s32.totalorder %s24, 0
    %s27 = sadd.s32 %s26, 1
    %s28 = scalar_select %p25, %s26, %s27
    %p31 = pneg %p25
    %p32 = scmp.eq.s32.totalorder %s16, 1
    %p33 = por %p31, %p32
    %p34 = scmp.ne.s32.totalorder %s26, %s29
    %p35 = scmp.eq.s32.totalorder %s16, 0
    %p36 = por %p34, %p35
    %p37 = scmp.ne.s32.totalorder %s26, %s29
    %p38 = scmp.eq.s32.totalorder %s21, 1
    %p39 = por %p37, %p38
    %p40 = scmp.ne.s32.totalorder %s29, %s30
    %p41 = scmp.eq.s32.totalorder %s21, 0
    %p42 = por %p40, %p41
    %p43 = scmp.ne.s32.totalorder %s29, %s30
    %p44 = scmp.eq.s32.totalorder %s22, 1
    %p45 = por %p43, %p44
    %p47 = scmp.ne.s32.totalorder %s30, %s46
    %p48 = scmp.eq.s32.totalorder %s22, 0
    %p49 = por %p47, %p48
    %s51 = sadd.s32 %s50, 1
    %p54 = scmp.eq.s32.totalorder %s16, 1
    %p55 = scmp.ne.s32.totalorder %s50, %s52
    %p56 = scmp.eq.s32.totalorder %s16, 0
    %p57 = por %p55, %p56
    %p58 = scmp.ne.s32.totalorder %s50, %s52
    %p59 = scmp.eq.s32.totalorder %s21, 1
    %p60 = por %p58, %p59
    %p61 = scmp.ne.s32.totalorder %s52, %s53
    %p62 = scmp.eq.s32.totalorder %s21, 0
    %p63 = por %p61, %p62
    %p64 = scmp.ne.s32.totalorder %s52, %s53
    %p65 = scmp.eq.s32.totalorder %s22, 1
    %p66 = por %p64, %p65
    %p68 = scmp.ne.s32.totalorder %s53, %s67
    %p69 = scmp.eq.s32.totalorder %s22, 0
    %p70 = por %p68, %p69
    %s72 = sadd.s32 %s71, 1
    %p75 = scmp.eq.s32.totalorder %s16, 1
    %p76 = scmp.ne.s32.totalorder %s71, %s73
    %p77 = scmp.eq.s32.totalorder %s16, 0
    %p78 = por %p76, %p77
    %p79 = scmp.ne.s32.totalorder %s71, %s73
    %p80 = scmp.eq.s32.totalorder %s21, 1
    %p81 = por %p79, %p80
    %p82 = scmp.ne.s32.totalorder %s73, %s74
    %p83 = scmp.eq.s32.totalorder %s21, 0
    %p84 = por %p82, %p83
    %p85 = scmp.ne.s32.totalorder %s73, %s74
    %p86 = scmp.eq.s32.totalorder %s22, 1
    %p87 = por %p85, %p86
    %p89 = scmp.ne.s32.totalorder %s74, %s88
    %p90 = scmp.eq.s32.totalorder %s22, 0
    %p91 = por %p89, %p90
    %s93 = sadd.s32 %s92, 1
    %p96 = scmp.eq.s32.totalorder %s16, 1
    %p97 = scmp.ne.s32.totalorder %s92, %s94
    %p98 = scmp.eq.s32.totalorder %s16, 0
    %p99 = por %p97, %p98
    %p100 = scmp.ne.s32.totalorder %s92, %s94
    %p101 = scmp.eq.s32.totalorder %s21, 1
    %p102 = por %p100, %p101
    %p103 = scmp.ne.s32.totalorder %s94, %s95
    %p104 = scmp.eq.s32.totalorder %s21, 0
    %p105 = por %p103, %p104
    %p106 = scmp.ne.s32.totalorder %s94, %s95
    %p107 = scmp.eq.s32.totalorder %s22, 1
    %p108 = por %p106, %p107
    %p110 = scmp.ne.s32.totalorder %s95, %s109
    %p111 = scmp.eq.s32.totalorder %s22, 0
    %p112 = por %p110, %p111
    %s114 = sadd.s32 %s113, 1
    %p117 = scmp.eq.s32.totalorder %s16, 1
    %p118 = scmp.ne.s32.totalorder %s113, %s115
    %p119 = scmp.eq.s32.totalorder %s16, 0
    %p120 = por %p118, %p119
    %p121 = scmp.ne.s32.totalorder %s113, %s115
    %p122 = scmp.eq.s32.totalorder %s21, 1
    %p123 = por %p121, %p122
    %p124 = scmp.ne.s32.totalorder %s115, %s116
    %p125 = scmp.eq.s32.totalorder %s21, 0
    %p126 = por %p124, %p125
    %p127 = scmp.ne.s32.totalorder %s115, %s116
    %p128 = scmp.eq.s32.totalorder %s22, 1
    %p129 = por %p127, %p128
    %p131 = scmp.ne.s32.totalorder %s116, %s130
    %p132 = scmp.eq.s32.totalorder %s22, 0
    %p133 = por %p131, %p132
    %s135 = sadd.s32 %s134, 1
    %p138 = scmp.eq.s32.totalorder %s16, 1
    %p139 = scmp.ne.s32.totalorder %s134, %s136
    %p140 = scmp.eq.s32.totalorder %s16, 0
    %p141 = por %p139, %p140
    %p142 = scmp.ne.s32.totalorder %s134, %s136
    %p143 = scmp.eq.s32.totalorder %s21, 1
    %p144 = por %p142, %p143
    %p145 = scmp.ne.s32.totalorder %s136, %s137
    %p146 = scmp.eq.s32.totalorder %s21, 0
    %p147 = por %p145, %p146
    %p148 = scmp.ne.s32.totalorder %s136, %s137
    %p149 = scmp.eq.s32.totalorder %s22, 1
    %p150 = por %p148, %p149
    %p152 = scmp.ne.s32.totalorder %s137, %s151
    %p153 = scmp.eq.s32.totalorder %s22, 0
    %p154 = por %p152, %p153
    %s156 = sadd.s32 %s155, 1
    %p159 = scmp.eq.s32.totalorder %s16, 1
    %p160 = scmp.ne.s32.totalorder %s155, %s157
    %p161 = scmp.eq.s32.totalorder %s16, 0
    %p162 = por %p160, %p161
    %p163 = scmp.ne.s32.totalorder %s155, %s157
    %p164 = scmp.eq.s32.totalorder %s21, 1
    %p165 = por %p163, %p164
    %p166 = scmp.ne.s32.totalorder %s157, %s158
    %p167 = scmp.eq.s32.totalorder %s21, 0
    %p168 = por %p166, %p167
    %p169 = scmp.ne.s32.totalorder %s157, %s158
    %p170 = scmp.eq.s32.totalorder %s22, 1
    %p171 = por %p169, %p170
    %p173 = scmp.ne.s32.totalorder %s158, %s172
    %p174 = scmp.eq.s32.totalorder %s22, 0
    %p175 = por %p173, %p174
    %s177 = sadd.s32 %s176, 1
    %p180 = scmp.eq.s32.totalorder %s16, 1
    %p181 = scmp.ne.s32.totalorder %s176, %s178
    %p182 = scmp.eq.s32.totalorder %s16, 0
    %p183 = por %p181, %p182
    %p184 = scmp.ne.s32.totalorder %s176, %s178
    %p185 = scmp.eq.s32.totalorder %s21, 1
    %p186 = por %p184, %p185
    %p187 = scmp.ne.s32.totalorder %s178, %s179
    %p188 = scmp.eq.s32.totalorder %s21, 0
    %p189 = por %p187, %p188
    %p190 = scmp.ne.s32.totalorder %s178, %s179
    %p191 = scmp.eq.s32.totalorder %s22, 1
    %p192 = por %p190, %p191
    %p194 = scmp.ne.s32.totalorder %s179, %s193
    %p195 = scmp.eq.s32.totalorder %s22, 0
    %p196 = por %p194, %p195
    %s198 = sadd.s32 %s197, 1
    %p201 = scmp.eq.s32.totalorder %s16, 1
    %p202 = scmp.ne.s32.totalorder %s197, %s199
    %p203 = scmp.eq.s32.totalorder %s16, 0
    %p204 = por %p202, %p203
    %p205 = scmp.ne.s32.totalorder %s197, %s199
    %p206 = scmp.eq.s32.totalorder %s21, 1
    %p207 = por %p205, %p206
    %p208 = scmp.ne.s32.totalorder %s199, %s200
    %p209 = scmp.eq.s32.totalorder %s21, 0
    %p210 = por %p208, %p209
    %p211 = scmp.ne.s32.totalorder %s199, %s200
    %p212 = scmp.eq.s32.totalorder %s22, 1
    %p213 = por %p211, %p212
    %p215 = scmp.ne.s32.totalorder %s200, %s214
    %p216 = scmp.eq.s32.totalorder %s22, 0
    %p217 = por %p215, %p216
    %s219 = sadd.s32 %s218, 1
    %p222 = scmp.eq.s32.totalorder %s16, 1
    %p223 = scmp.ne.s32.totalorder %s218, %s220
    %p224 = scmp.eq.s32.totalorder %s16, 0
    %p225 = por %p223, %p224
    %p226 = scmp.ne.s32.totalorder %s218, %s220
    %p227 = scmp.eq.s32.totalorder %s21, 1
    %p228 = por %p226, %p227
    %p229 = scmp.ne.s32.totalorder %s220, %s221
    %p230 = scmp.eq.s32.totalorder %s21, 0
    %p231 = por %p229, %p230
    %p232 = scmp.ne.s32.totalorder %s220, %s221
    %p233 = scmp.eq.s32.totalorder %s22, 1
    %p234 = por %p232, %p233
    %p236 = scmp.ne.s32.totalorder %s221, %s235
    %p237 = scmp.eq.s32.totalorder %s22, 0
    %p238 = por %p236, %p237
    %s239 = ssub.s32 %s16, %s23
    %p240 = scmp.eq.s32.totalorder %s239, 0
    %s242 = sadd.s32 %s241, 1
    %s243 = scalar_select %p240, %s241, %s242
    %p246 = pneg %p240
    %p247 = scmp.eq.s32.totalorder %s16, 1
    %p248 = por %p246, %p247
    %p249 = scmp.ne.s32.totalorder %s241, %s244
    %p250 = scmp.eq.s32.totalorder %s16, 0
    %p251 = por %p249, %p250
    %p252 = scmp.ne.s32.totalorder %s241, %s244
    %p253 = scmp.eq.s32.totalorder %s21, 1
    %p254 = por %p252, %p253
    %p255 = scmp.ne.s32.totalorder %s244, %s245
    %p256 = scmp.eq.s32.totalorder %s21, 0
    %p257 = por %p255, %p256
    %p258 = scmp.ne.s32.totalorder %s244, %s245
    %p259 = scmp.eq.s32.totalorder %s22, 1
    %p260 = por %p258, %p259
    %p262 = scmp.ne.s32.totalorder %s245, %s261
    %p263 = scmp.eq.s32.totalorder %s22, 0
    %p264 = por %p262, %p263
    %p265 = scmp.le.s32.totalorder 1, %s16
    %p266 = scmp.lt.s32.totalorder %s16, 3
    %p267 = pnand %p265, %p266
    %p268 = pneg %p267
    // Predicated region
    $region9: #{bottleneck_forward.1} parent=5 // pred_check
      _
    $region10: #{bottleneck_forward.1} parent=5 // pred_check_branch
      %270 = sbr.rel (%p267) target = $region12
    $region11: #{bottleneck_forward.1} parent=5 // pred_region
      %s271 = ssub.s32 %s16, 1
      // Predicated region
      $region13: #{bottleneck_forward.1} parent=11 // pred_check
        %p272 = pneg %p63
      $region14: #{bottleneck_forward.1} parent=11 // pred_check_branch
        %274 = sbr.rel (%p272) target = $region16
      $region15: #{bottleneck_forward.1} parent=11 // pred_region
        _
      $region16: #{bottleneck_forward.1} parent=11 // pred_fallthru
        _
      // Predicated region
      $region17: #{bottleneck_forward.1} parent=11 // pred_check
        %p275 = pneg %p84
      $region18: #{bottleneck_forward.1} parent=11 // pred_check_branch
        %277 = sbr.rel (%p275) target = $region20
      $region19: #{bottleneck_forward.1} parent=11 // pred_region
        _
      $region20: #{bottleneck_forward.1} parent=11 // pred_fallthru
        _
      // Predicated region
      $region21: #{bottleneck_forward.1} parent=11 // pred_check
        %p278 = pneg %p105
      $region22: #{bottleneck_forward.1} parent=11 // pred_check_branch
        %280 = sbr.rel (%p278) target = $region24
      $region23: #{bottleneck_forward.1} parent=11 // pred_region
        _
      $region24: #{bottleneck_forward.1} parent=11 // pred_fallthru
        _
      // Predicated region
      $region25: #{bottleneck_forward.1} parent=11 // pred_check
        %p281 = pneg %p126
      $region26: #{bottleneck_forward.1} parent=11 // pred_check_branch
        %283 = sbr.rel (%p281) target = $region28
      $region27: #{bottleneck_forward.1} parent=11 // pred_region
        _
      $region28: #{bottleneck_forward.1} parent=11 // pred_fallthru
        _
      // Predicated region
      $region29: #{bottleneck_forward.1} parent=11 // pred_check
        %p284 = pneg %p147
      $region30: #{bottleneck_forward.1} parent=11 // pred_check_branch
        %286 = sbr.rel (%p284) target = $region32
      $region31: #{bottleneck_forward.1} parent=11 // pred_region
        _
      $region32: #{bottleneck_forward.1} parent=11 // pred_fallthru
        _
      // Predicated region
      $region33: #{bottleneck_forward.1} parent=11 // pred_check
        %p287 = pneg %p168
      $region34: #{bottleneck_forward.1} parent=11 // pred_check_branch
        %289 = sbr.rel (%p287) target = $region36
      $region35: #{bottleneck_forward.1} parent=11 // pred_region
        _
      $region36: #{bottleneck_forward.1} parent=11 // pred_fallthru
        _
      // Predicated region
      $region37: #{bottleneck_forward.1} parent=11 // pred_check
        %p290 = pneg %p189
      $region38: #{bottleneck_forward.1} parent=11 // pred_check_branch
        %292 = sbr.rel (%p290) target = $region40
      $region39: #{bottleneck_forward.1} parent=11 // pred_region
        _
      $region40: #{bottleneck_forward.1} parent=11 // pred_fallthru
        _
      // Predicated region
      $region41: #{bottleneck_forward.1} parent=11 // pred_check
        %p293 = pneg %p210
      $region42: #{bottleneck_forward.1} parent=11 // pred_check_branch
        %295 = sbr.rel (%p293) target = $region44
      $region43: #{bottleneck_forward.1} parent=11 // pred_region
        _
      $region44: #{bottleneck_forward.1} parent=11 // pred_fallthru
        _
      // Predicated region
      $region45: #{bottleneck_forward.1} parent=11 // pred_check
        %p296 = pneg %p231
      $region46: #{bottleneck_forward.1} parent=11 // pred_check_branch
        %298 = sbr.rel (%p296) target = $region48
      $region47: #{bottleneck_forward.1} parent=11 // pred_region
        _
      $region48: #{bottleneck_forward.1} parent=11 // pred_fallthru
        _
    $region12: #{bottleneck_forward.1} parent=5 // pred_fallthru
      _
    %p299 = scmp.lt.s32.totalorder %s16, 2
    // Predicated region
    $region49: #{bottleneck_forward.1} parent=5 // pred_check
      %p300 = pneg %p299
    $region50: #{bottleneck_forward.1} parent=5 // pred_check_branch
      %302 = sbr.rel (%p300) target = $region52
    $region51: #{bottleneck_forward.1} parent=5 // pred_region
      // Predicated region
      $region53: #{bottleneck_forward.1} parent=51 // pred_check
        %p303 = pneg %p36
      $region54: #{bottleneck_forward.1} parent=51 // pred_check_branch
        %305 = sbr.rel (%p303) target = $region56
      $region55: #{bottleneck_forward.1} parent=51 // pred_region
        %p306 = scmp.lt.s32.totalorder %s16, 1
        %s307 = scalar_select %p306, %s16, 1
        %s308 = smul.addr %s307, 32
        %s309 = smul.addr %s308, 8
        %s310 = scalar_lea.vmem %s0, %s309
      $region56: #{bottleneck_forward.1} parent=51 // pred_fallthru
        _
    $region52: #{bottleneck_forward.1} parent=5 // pred_fallthru
      _
    %p311 = scmp.le.s32.totalorder 1, %s16
    %p312 = scmp.lt.s32.totalorder %s16, 3
    %p313 = pnand %p311, %p312
    %p314 = pneg %p313
    // Predicated region
    $region57: #{bottleneck_forward.1} parent=5 // pred_check
      _
    $region58: #{bottleneck_forward.1} parent=5 // pred_check_branch
      %316 = sbr.rel (%p313) target = $region60
    $region59: #{bottleneck_forward.1} parent=5 // pred_region
      %s317 = ssub.s32 %s16, 1
      %p318 = scmp.lt.s32.totalorder %s21, 1
      %s319 = scalar_select %p318, %s21, 1
      %s320 = smul.addr %s319, 32
      %s321 = smul.addr %s320, 8
      %s322 = scalar_lea.vmem %s0, %s321
      %p323 = pneg %p42
      %p324 = pneg %p39
      %p325 = pneg %p63
      %p326 = pneg %p60
      %p327 = pneg %p84
      %p328 = pneg %p81
      %p329 = pneg %p105
      %p330 = pneg %p102
      %p331 = pneg %p126
      %p332 = pneg %p123
      %p333 = pneg %p147
      %p334 = pneg %p144
      %p335 = pneg %p168
      %p336 = pneg %p165
      %p337 = pneg %p189
      %p338 = pneg %p186
      %p339 = pneg %p210
      %p340 = pneg %p207
      %p341 = pneg %p231
      %p342 = pneg %p228
      %p343 = pneg %p257
      %p344 = pneg %p254
      %p345 = scmp.lt.s32.totalorder %s21, 1
      %s346 = scalar_select %p345, %s21, 1
      %s347 = smul.addr %s346, 32
      %s348 = smul.addr %s347, 8
      %s349 = scalar_lea.vmem %s10, %s348
      %p350 = scmp.lt.s32.totalorder %s21, 1
      %s351 = scalar_select %p350, %s21, 1
      %s352 = smul.addr %s351, 32
      %s353 = smul.addr %s352, 8
      %s354 = scalar_lea.vmem %s0, %s353
      %p355 = scmp.lt.s32.totalorder %s21, 1
      %s356 = scalar_select %p355, %s21, 1
      %s357 = smul.addr %s356, 32
      %s358 = smul.addr %s357, 8
      %s359 = scalar_lea.vmem %s10, %s358
      %v361 = vld [vmem:[%s354] sm:$0xff]
      %v362 = vld [vmem:[%s354 + $0x8] sm:$0xff]
      %v363 = vld [vmem:[%s354 + $0x10] sm:$0xff]
      %v364 = vld [vmem:[%s354 + $0x18] sm:$0xff]
      %v365 = vld [vmem:[%s354 + $0x20] sm:$0xff]
      %v366 = vld [vmem:[%s354 + $0x28] sm:$0xff]
      %v367 = vld [vmem:[%s354 + $0x30] sm:$0xff]
      %v368 = vld [vmem:[%s354 + $0x38] sm:$0xff]
      %v369 = vld [vmem:[%s354 + $0x40] sm:$0xff]
      %v370 = vld [vmem:[%s354 + $0x48] sm:$0xff]
      %v371 = vld [vmem:[%s354 + $0x50] sm:$0xff]
      %v372 = vld [vmem:[%s354 + $0x58] sm:$0xff]
      %v373 = vld [vmem:[%s354 + $0x60] sm:$0xff]
      %v374 = vld [vmem:[%s354 + $0x68] sm:$0xff]
      %v375 = vld [vmem:[%s354 + $0x70] sm:$0xff]
      %v376 = vld [vmem:[%s354 + $0x78] sm:$0xff]
      %v377 = vld [vmem:[%s354 + $0x80] sm:$0xff]
      %v378 = vld [vmem:[%s354 + $0x88] sm:$0xff]
      %v379 = vld [vmem:[%s354 + $0x90] sm:$0xff]
      %v380 = vld [vmem:[%s354 + $0x98] sm:$0xff]
      %v381 = vld [vmem:[%s354 + $0xa0] sm:$0xff]
      %v382 = vld [vmem:[%s354 + $0xa8] sm:$0xff]
      %v383 = vld [vmem:[%s354 + $0xb0] sm:$0xff]
      %v384 = vld [vmem:[%s354 + $0xb8] sm:$0xff]
      %v385 = vld [vmem:[%s354 + $0xc0] sm:$0xff]
      %v386 = vld [vmem:[%s354 + $0xc8] sm:$0xff]
      %v387 = vld [vmem:[%s354 + $0xd0] sm:$0xff]
      %v388 = vld [vmem:[%s354 + $0xd8] sm:$0xff]
      %v389 = vld [vmem:[%s354 + $0xe0] sm:$0xff]
      %v390 = vld [vmem:[%s354 + $0xe8] sm:$0xff]
      %v391 = vld [vmem:[%s354 + $0xf0] sm:$0xff]
      %v392 = vld [vmem:[%s354 + $0xf8] sm:$0xff]
      %v393 = vpack.c.bf16 %v362, %v361
      %v394 = vpack.c.bf16 %v364, %v363
      %v395 = vpack.c.bf16 %v366, %v365
      %v396 = vpack.c.bf16 %v368, %v367
      %v397 = vpack.c.bf16 %v370, %v369
      %v398 = vpack.c.bf16 %v372, %v371
      %v399 = vpack.c.bf16 %v374, %v373
      %v400 = vpack.c.bf16 %v376, %v375
      %v401 = vpack.c.bf16 %v378, %v377
      %v402 = vpack.c.bf16 %v380, %v379
      %v403 = vpack.c.bf16 %v382, %v381
      %v404 = vpack.c.bf16 %v384, %v383
      %v405 = vpack.c.bf16 %v386, %v385
      %v406 = vpack.c.bf16 %v388, %v387
      %v407 = vpack.c.bf16 %v390, %v389
      %v408 = vpack.c.bf16 %v392, %v391
      %v409 = vld [vmem:[%s1] sm:$0xf]
      %v410 = vld [vmem:[%s1 + $0x4] sm:$0xf]
      %v413 = vunpack.c.l.b16 %v409
      %v414 = vunpack.c.l.b16 %v410
      %v415 = vpack.c.b16 %v414, %v413
      %vm417 = vcmask 130048
      %v419 = vsel %vm417, %v393, 0
      %v422 = vsel %vm417, %v394, 0
      %v425 = vsel %vm417, %v395, 0
      %v428 = vsel %vm417, %v396, 0
      %v431 = vsel %vm417, %v397, 0
      %v434 = vsel %vm417, %v398, 0
      %v437 = vsel %vm417, %v399, 0
      %v440 = vsel %vm417, %v400, 0
      %v443 = vsel %vm417, %v401, 0
      %v446 = vsel %vm417, %v402, 0
      %v449 = vsel %vm417, %v403, 0
      %v452 = vsel %vm417, %v404, 0
      %v455 = vsel %vm417, %v405, 0
      %v458 = vsel %vm417, %v406, 0
      %v461 = vsel %vm417, %v407, 0
      %v464 = vsel %vm417, %v408, 0
      %466 = vmatprep.subr.bf16.mxu0 0
      %467 = vmatpush1.bf16.msra.mxu0 %v415
      %468 = vmatprep.subr.bf16.mxu0 0
      %469 = vmatpush1.bf16.msra.mxu0 0
      %470 = vmatprep.subr.bf16.mxu0 0
      %471 = vmatpush1.bf16.msra.mxu0 0
      %472 = vmatprep.subr.bf16.mxu0 0
      %473 = vmatpush1.bf16.msra.mxu0 0
      %474 = vmatprep.subr.bf16.mxu0 0
      %475 = vmatpush1.bf16.msra.mxu0 0
      %476 = vmatprep.subr.bf16.mxu0 0
      %477 = vmatpush1.bf16.msra.mxu0 0
      %478 = vmatprep.subr.bf16.mxu0 0
      %479 = vmatpush1.bf16.msra.mxu0 0
      %480 = vmatprep.subr.bf16.mxu0 0
      %481 = vmatpush1.bf16.msra.mxu0 0
      %482 = vmatprep.subr.bf16.mxu0 0
      %483 = vmatpush1.bf16.msra.mxu0 0
      %484 = vmatprep.subr.bf16.mxu0 0
      %485 = vmatpush1.bf16.msra.mxu0 0
      %486 = vmatprep.subr.bf16.mxu0 0
      %487 = vmatpush1.bf16.msra.mxu0 0
      %488 = vmatprep.subr.bf16.mxu0 0
      %489 = vmatpush1.bf16.msra.mxu0 0
      %490 = vmatprep.subr.bf16.mxu0 0
      %491 = vmatpush1.bf16.msra.mxu0 0
      %492 = vmatprep.subr.bf16.mxu0 0
      %493 = vmatpush1.bf16.msra.mxu0 0
      %494 = vmatprep.subr.bf16.mxu0 0
      %495 = vmatpush1.bf16.msra.mxu0 0
      %496 = vmatprep.subr.bf16.mxu0 0
      %497 = vmatpush1.bf16.msra.mxu0 0
      %498 = vmatprep.mubr.bf16.mxu0 0
      %499 = vmatmul.mubr.bf16.gmra.mrb[0].mxu0 %v419
      %v500 = vpop.f32.mrb[0].mxu0
      %v501 = vadd.f32 0.0, %v500
      %v502 = vpop.f32.mrb[0].mxu0
      %v503 = vpop.f32.mrb[0].mxu0
      %v504 = vadd.f32 0.0, %v503
      %v505 = vpop.f32.mrb[0].mxu0
      %506 = vmatprep.mubr.bf16.mxu0 0
      %507 = vmatmul.mubr.bf16.gmra.mrb[0].mxu0 %v422
      %v508 = vpop.f32.mrb[0].mxu0
      %v509 = vadd.f32 0.0, %v508
      %v510 = vpop.f32.mrb[0].mxu0
      %v511 = vpop.f32.mrb[0].mxu0
      %v512 = vadd.f32 0.0, %v511
      %v513 = vpop.f32.mrb[0].mxu0
      %514 = vmatprep.mubr.bf16.mxu0 0
      %515 = vmatmul.mubr.bf16.gmra.mrb[0].mxu0 %v425
      %v516 = vpop.f32.mrb[0].mxu0
      %v517 = vadd.f32 0.0, %v516
      %v518 = vpop.f32.mrb[0].mxu0
      %v519 = vpop.f32.mrb[0].mxu0
      %v520 = vadd.f32 0.0, %v519
      %v521 = vpop.f32.mrb[0].mxu0
      %522 = vmatprep.mubr.bf16.mxu0 0
      %523 = vmatmul.mubr.bf16.gmra.mrb[0].mxu0 %v428
      %v524 = vpop.f32.mrb[0].mxu0
      %v525 = vadd.f32 0.0, %v524
      %v526 = vpop.f32.mrb[0].mxu0
      %v527 = vpop.f32.mrb[0].mxu0
      %v528 = vadd.f32 0.0, %v527
      %v529 = vpop.f32.mrb[0].mxu0
      %530 = vmatprep.mubr.bf16.mxu0 0
      %531 = vmatmul.mubr.bf16.gmra.mrb[0].mxu0 %v431
      %v532 = vpop.f32.mrb[0].mxu0
      %v533 = vadd.f32 0.0, %v532
      %v534 = vpop.f32.mrb[0].mxu0
      %v535 = vpop.f32.mrb[0].mxu0
      %v536 = vadd.f32 0.0, %v535
      %v537 = vpop.f32.mrb[0].mxu0
      %538 = vmatprep.mubr.bf16.mxu0 0
      %539 = vmatmul.mubr.bf16.gmra.mrb[0].mxu0 %v434
      %v540 = vpop.f32.mrb[0].mxu0
      %v541 = vadd.f32 0.0, %v540
      %v542 = vpop.f32.mrb[0].mxu0
      %v543 = vpop.f32.mrb[0].mxu0
      %v544 = vadd.f32 0.0, %v543
      %v545 = vpop.f32.mrb[0].mxu0
      %546 = vmatprep.mubr.bf16.mxu0 0
      %547 = vmatmul.mubr.bf16.gmra.mrb[0].mxu0 %v437
      %v548 = vpop.f32.mrb[0].mxu0
      %v549 = vadd.f32 0.0, %v548
      %v550 = vpop.f32.mrb[0].mxu0
      %v551 = vpop.f32.mrb[0].mxu0
      %v552 = vadd.f32 0.0, %v551
      %v553 = vpop.f32.mrb[0].mxu0
      %554 = vmatprep.mubr.bf16.mxu0 0
      %555 = vmatmul.mubr.bf16.gmra.mrb[0].mxu0 %v440
      %v556 = vpop.f32.mrb[0].mxu0
      %v557 = vadd.f32 0.0, %v556
      %v558 = vpop.f32.mrb[0].mxu0
      %v559 = vpop.f32.mrb[0].mxu0
      %v560 = vadd.f32 0.0, %v559
      %v561 = vpop.f32.mrb[0].mxu0
      %562 = vmatprep.mubr.bf16.mxu0 0
      %563 = vmatmul.mubr.bf16.gmra.mrb[0].mxu0 %v443
      %v564 = vpop.f32.mrb[0].mxu0
      %v565 = vadd.f32 0.0, %v564
      %v566 = vpop.f32.mrb[0].mxu0
      %v567 = vpop.f32.mrb[0].mxu0
      %v568 = vadd.f32 0.0, %v567
      %v569 = vpop.f32.mrb[0].mxu0
      %570 = vmatprep.mubr.bf16.mxu0 0
      %571 = vmatmul.mubr.bf16.gmra.mrb[0].mxu0 %v446
      %v572 = vpop.f32.mrb[0].mxu0
      %v573 = vadd.f32 0.0, %v572
      %v574 = vpop.f32.mrb[0].mxu0
      %v575 = vpop.f32.mrb[0].mxu0
      %v576 = vadd.f32 0.0, %v575
      %v577 = vpop.f32.mrb[0].mxu0
      %578 = vmatprep.mubr.bf16.mxu0 0
      %579 = vmatmul.mubr.bf16.gmra.mrb[0].mxu0 %v449
      %v580 = vpop.f32.mrb[0].mxu0
      %v581 = vadd.f32 0.0, %v580
      %v582 = vpop.f32.mrb[0].mxu0
      %v583 = vpop.f32.mrb[0].mxu0
      %v584 = vadd.f32 0.0, %v583
      %v585 = vpop.f32.mrb[0].mxu0
      %586 = vmatprep.mubr.bf16.mxu0 0
      %587 = vmatmul.mubr.bf16.gmra.mrb[0].mxu0 %v452
      %v588 = vpop.f32.mrb[0].mxu0
      %v589 = vadd.f32 0.0, %v588
      %v590 = vpop.f32.mrb[0].mxu0
      %v591 = vpop.f32.mrb[0].mxu0
      %v592 = vadd.f32 0.0, %v591
      %v593 = vpop.f32.mrb[0].mxu0
      %594 = vmatprep.mubr.bf16.mxu0 0
      %595 = vmatmul.mubr.bf16.gmra.mrb[0].mxu0 %v455
      %v596 = vpop.f32.mrb[0].mxu0
      %v597 = vadd.f32 0.0, %v596
      %v598 = vpop.f32.mrb[0].mxu0
      %v599 = vpop.f32.mrb[0].mxu0
      %v600 = vadd.f32 0.0, %v599
      %v601 = vpop.f32.mrb[0].mxu0
      %602 = vmatprep.mubr.bf16.mxu0 0
      %603 = vmatmul.mubr.bf16.gmra.mrb[0].mxu0 %v458
      %v604 = vpop.f32.mrb[0].mxu0
      %v605 = vadd.f32 0.0, %v604
      %v606 = vpop.f32.mrb[0].mxu0
      %v607 = vpop.f32.mrb[0].mxu0
      %v608 = vadd.f32 0.0, %v607
      %v609 = vpop.f32.mrb[0].mxu0
      %610 = vmatprep.mubr.bf16.mxu0 0
      %611 = vmatmul.mubr.bf16.gmra.mrb[0].mxu0 %v461
      %v612 = vpop.f32.mrb[0].mxu0
      %v613 = vadd.f32 0.0, %v612
      %v614 = vpop.f32.mrb[0].mxu0
      %v615 = vpop.f32.mrb[0].mxu0
      %v616 = vadd.f32 0.0, %v615
      %v617 = vpop.f32.mrb[0].mxu0
      %618 = vmatprep.mubr.bf16.mxu0 0
      %619 = vmatmul.mubr.bf16.gmra.mrb[0].mxu0 %v464
      %v620 = vpop.f32.mrb[0].mxu0
      %v621 = vadd.f32 0.0, %v620
      %v622 = vpop.f32.mrb[0].mxu0
      %v623 = vpop.f32.mrb[0].mxu0
      %v624 = vadd.f32 0.0, %v623
      %v625 = vpop.f32.mrb[0].mxu0
      %626 = vdwg.mxu0
      %v627 = vld [vmem:[%s4] sm:$0x1]
      %v629 = vlaneseq
      %v630 = vshrl.u32 %v629, 7
      %v631 = vsub.s32 0, %v630
      %v632 = vrot.slane %v627, %v631
      %v634 = vmul.f32 %v501, %v632
      %v635 = vmul.f32 %v504, %v632
      %v636 = vmul.f32 %v509, %v632
      %v637 = vmul.f32 %v512, %v632
      %v638 = vmul.f32 %v517, %v632
      %v639 = vmul.f32 %v520, %v632
      %v640 = vmul.f32 %v525, %v632
      %v641 = vmul.f32 %v528, %v632
      %v642 = vmul.f32 %v533, %v632
      %v643 = vmul.f32 %v536, %v632
      %v644 = vmul.f32 %v541, %v632
      %v645 = vmul.f32 %v544, %v632
      %v646 = vmul.f32 %v549, %v632
      %v647 = vmul.f32 %v552, %v632
      %v648 = vmul.f32 %v557, %v632
      %v649 = vmul.f32 %v560, %v632
      %v650 = vmul.f32 %v565, %v632
      %v651 = vmul.f32 %v568, %v632
      %v652 = vmul.f32 %v573, %v632
      %v653 = vmul.f32 %v576, %v632
      %v654 = vmul.f32 %v581, %v632
      %v655 = vmul.f32 %v584, %v632
      %v656 = vmul.f32 %v589, %v632
      %v657 = vmul.f32 %v592, %v632
      %v658 = vmul.f32 %v597, %v632
      %v659 = vmul.f32 %v600, %v632
      %v660 = vmul.f32 %v605, %v632
      %v661 = vmul.f32 %v608, %v632
      %v662 = vmul.f32 %v613, %v632
      %v663 = vmul.f32 %v616, %v632
      %v664 = vmul.f32 %v621, %v632
      %v665 = vmul.f32 %v624, %v632
      %v666 = vld [vmem:[%s5] sm:$0x1]
      %v668 = vlaneseq
      %v669 = vshrl.u32 %v668, 7
      %v670 = vsub.s32 0, %v669
      %v671 = vrot.slane %v666, %v670
      %v673 = vadd.f32 %v634, %v671
      %v674 = vadd.f32 %v635, %v671
      %v675 = vadd.f32 %v636, %v671
      %v676 = vadd.f32 %v637, %v671
      %v677 = vadd.f32 %v638, %v671
      %v678 = vadd.f32 %v639, %v671
      %v679 = vadd.f32 %v640, %v671
      %v680 = vadd.f32 %v641, %v671
      %v681 = vadd.f32 %v642, %v671
      %v682 = vadd.f32 %v643, %v671
      %v683 = vadd.f32 %v644, %v671
      %v684 = vadd.f32 %v645, %v671
      %v685 = vadd.f32 %v646, %v671
      %v686 = vadd.f32 %v647, %v671
      %v687 = vadd.f32 %v648, %v671
      %v688 = vadd.f32 %v649, %v671
      %v689 = vadd.f32 %v650, %v671
      %v690 = vadd.f32 %v651, %v671
      %v691 = vadd.f32 %v652, %v671
      %v692 = vadd.f32 %v653, %v671
      %v693 = vadd.f32 %v654, %v671
      %v694 = vadd.f32 %v655, %v671
      %v695 = vadd.f32 %v656, %v671
      %v696 = vadd.f32 %v657, %v671
      %v697 = vadd.f32 %v658, %v671
      %v698 = vadd.f32 %v659, %v671
      %v699 = vadd.f32 %v660, %v671
      %v700 = vadd.f32 %v661, %v671
      %v701 = vadd.f32 %v662, %v671
      %v702 = vadd.f32 %v663, %v671
      %v703 = vadd.f32 %v664, %v671
      %v704 = vadd.f32 %v665, %v671
      %v705 = vmax.f32 %v673, 0.0
      %v706 = vmax.f32 %v674, 0.0
      %v707 = vmax.f32 %v675, 0.0
      %v708 = vmax.f32 %v676, 0.0
      %v709 = vmax.f32 %v677, 0.0
      %v710 = vmax.f32 %v678, 0.0
      %v711 = vmax.f32 %v679, 0.0
      %v712 = vmax.f32 %v680, 0.0
      %v713 = vmax.f32 %v681, 0.0
      %v714 = vmax.f32 %v682, 0.0
      %v715 = vmax.f32 %v683, 0.0
      %v716 = vmax.f32 %v684, 0.0
      %v717 = vmax.f32 %v685, 0.0
      %v718 = vmax.f32 %v686, 0.0
      %v719 = vmax.f32 %v687, 0.0
      %v720 = vmax.f32 %v688, 0.0
      %v721 = vmax.f32 %v689, 0.0
      %v722 = vmax.f32 %v690, 0.0
      %v723 = vmax.f32 %v691, 0.0
      %v724 = vmax.f32 %v692, 0.0
      %v725 = vmax.f32 %v693, 0.0
      %v726 = vmax.f32 %v694, 0.0
      %v727 = vmax.f32 %v695, 0.0
      %v728 = vmax.f32 %v696, 0.0
      %v729 = vmax.f32 %v697, 0.0
      %v730 = vmax.f32 %v698, 0.0
      %v731 = vmax.f32 %v699, 0.0
      %v732 = vmax.f32 %v700, 0.0
      %v733 = vmax.f32 %v701, 0.0
      %v734 = vmax.f32 %v702, 0.0
      %v735 = vmax.f32 %v703, 0.0
      %v736 = vmax.f32 %v704, 0.0
      %vm737 = vcmask 31744
      %738 = vst.msk [vmem:[#allocation2] sm:$0xff] %vm737, 0.0
      %739 = vst.msk [vmem:[#allocation2 + $0x8] sm:$0xff] %vm737, 0.0
      %vm740 = vcmask 25600
      %741 = vst.msk [vmem:[#allocation2 + $0x10] sm:$0x3] %vm740, 0.0
      %742 = vst.msk [vmem:[#allocation2 + $0x18] sm:$0xff] %vm737, 0.0
      %743 = vst.msk [vmem:[#allocation2 + $0x20] sm:$0xff] %vm737, 0.0
      %744 = vst.msk [vmem:[#allocation2 + $0x28] sm:$0x3] %vm740, 0.0
      %745 = vst.msk [vmem:[#allocation2 + $0x30] sm:$0xff] %vm737, 0.0
      %746 = vst.msk [vmem:[#allocation2 + $0x38] sm:$0xff] %vm737, 0.0
      %747 = vst.msk [vmem:[#allocation2 + $0x40] sm:$0x3] %vm740, 0.0
      %748 = vst.msk [vmem:[#allocation2 + $0x48] sm:$0xff] %vm737, 0.0
      %749 = vst.msk [vmem:[#allocation2 + $0x50] sm:$0xff] %vm737, 0.0
      %750 = vst.msk [vmem:[#allocation2 + $0x58] sm:$0x3] %vm740, 0.0
      %751 = vst.msk [vmem:[#allocation2 + $0x60] sm:$0xff] %vm737, 0.0
      %752 = vst.msk [vmem:[#allocation2 + $0x68] sm:$0xff] %vm737, 0.0
      %753 = vst.msk [vmem:[#allocation2 + $0x70] sm:$0x3] %vm740, 0.0
      %754 = vst.msk [vmem:[#allocation2 + $0x78] sm:$0xff] %vm737, 0.0
      %755 = vst.msk [vmem:[#allocation2 + $0x80] sm:$0xff] %vm737, 0.0
      %756 = vst.msk [vmem:[#allocation2 + $0x88] sm:$0x3] %vm740, 0.0
      %757 = vst.msk [vmem:[#allocation2 + $0x90] sm:$0xff] %vm737, 0.0
      %758 = vst.msk [vmem:[#allocation2 + $0x98] sm:$0xff] %vm737, 0.0
      %759 = vst.msk [vmem:[#allocation2 + $0xa0] sm:$0x3] %vm740, 0.0
      %760 = vst.msk [vmem:[#allocation2 + $0xa8] sm:$0xff] %vm737, 0.0
      %761 = vst.msk [vmem:[#allocation2 + $0xb0] sm:$0xff] %vm737, 0.0
      %762 = vst.msk [vmem:[#allocation2 + $0xb8] sm:$0x3] %vm740, 0.0
      %763 = vst.msk [vmem:[#allocation2 + $0xc0] sm:$0xff] %vm737, 0.0
      %764 = vst.msk [vmem:[#allocation2 + $0xc8] sm:$0xff] %vm737, 0.0
      %765 = vst.msk [vmem:[#allocation2 + $0xd0] sm:$0x3] %vm740, 0.0
      %766 = vst.msk [vmem:[#allocation2 + $0xd8] sm:$0xff] %vm737, 0.0
      %767 = vst.msk [vmem:[#allocation2 + $0xe0] sm:$0xff] %vm737, 0.0
      %768 = vst.msk [vmem:[#allocation2 + $0xe8] sm:$0x3] %vm740, 0.0
      %769 = vst.msk [vmem:[#allocation2 + $0xf0] sm:$0xff] %vm737, 0.0
      %770 = vst.msk [vmem:[#allocation2 + $0xf8] sm:$0xff] %vm737, 0.0
      %771 = vst.msk [vmem:[#allocation2 + $0x100] sm:$0x3] %vm740, 0.0
      %772 = vst.msk [vmem:[#allocation2 + $0x108] sm:$0xff] %vm737, 0.0
      %773 = vst.msk [vmem:[#allocation2 + $0x110] sm:$0xff] %vm737, 0.0
      %774 = vst.msk [vmem:[#allocation2 + $0x118] sm:$0x3] %vm740, 0.0
      %775 = vst.msk [vmem:[#allocation2 + $0x120] sm:$0xff] %vm737, 0.0
      %776 = vst.msk [vmem:[#allocation2 + $0x128] sm:$0xff] %vm737, 0.0
      %777 = vst.msk [vmem:[#allocation2 + $0x130] sm:$0x3] %vm740, 0.0
      %778 = vst.msk [vmem:[#allocation2 + $0x138] sm:$0xff] %vm737, 0.0
      %779 = vst.msk [vmem:[#allocation2 + $0x140] sm:$0xff] %vm737, 0.0
      %780 = vst.msk [vmem:[#allocation2 + $0x148] sm:$0x3] %vm740, 0.0
      %781 = vst.msk [vmem:[#allocation2 + $0x150] sm:$0xff] %vm737, 0.0
      %782 = vst.msk [vmem:[#allocation2 + $0x158] sm:$0xff] %vm737, 0.0
      %783 = vst.msk [vmem:[#allocation2 + $0x160] sm:$0x3] %vm740, 0.0
      %784 = vst.msk [vmem:[#allocation2 + $0x168] sm:$0xff] %vm737, 0.0
      %785 = vst.msk [vmem:[#allocation2 + $0x170] sm:$0xff] %vm737, 0.0
      %786 = vst.msk [vmem:[#allocation2 + $0x178] sm:$0x3] %vm740, 0.0
      %787 = vst.msk [vmem:[#allocation2 + $0x180] sm:$0xff] %vm737, 0.0
      %788 = vst.msk [vmem:[#allocation2 + $0x188] sm:$0xff] %vm737, 0.0
      %789 = vst.msk [vmem:[#allocation2 + $0x190] sm:$0x3] %vm740, 0.0
      %790 = vst.msk [vmem:[#allocation2 + $0x198] sm:$0xff] %vm737, 0.0
      %791 = vst.msk [vmem:[#allocation2 + $0x1a0] sm:$0xff] %vm737, 0.0
      %792 = vst.msk [vmem:[#allocation2 + $0x1a8] sm:$0x3] %vm740, 0.0
      %s793 = scalar_lea.vmem [#allocation2], 24
      %794 = vst.msk [vmem:[%s793 + $0x1] sm:$0xff] %vm737, %v705
      %795 = vst.msk [vmem:[%s793 + $0x9] sm:$0xff] %vm737, %v706
      %796 = vst.msk [vmem:[%s793 + $0x19] sm:$0xff] %vm737, %v707
      %797 = vst.msk [vmem:[%s793 + $0x21] sm:$0xff] %vm737, %v708
      %798 = vst.msk [vmem:[%s793 + $0x31] sm:$0xff] %vm737, %v709
      %799 = vst.msk [vmem:[%s793 + $0x39] sm:$0xff] %vm737, %v710
      %800 = vst.msk [vmem:[%s793 + $0x49] sm:$0xff] %vm737, %v711
      %801 = vst.msk [vmem:[%s793 + $0x51] sm:$0xff] %vm737, %v712
      %802 = vst.msk [vmem:[%s793 + $0x61] sm:$0xff] %vm737, %v713
      %803 = vst.msk [vmem:[%s793 + $0x69] sm:$0xff] %vm737, %v714
      %804 = vst.msk [vmem:[%s793 + $0x79] sm:$0xff] %vm737, %v715
      %805 = vst.msk [vmem:[%s793 + $0x81] sm:$0xff] %vm737, %v716
      %806 = vst.msk [vmem:[%s793 + $0x91] sm:$0xff] %vm737, %v717
      %807 = vst.msk [vmem:[%s793 + $0x99] sm:$0xff] %vm737, %v718
      %808 = vst.msk [vmem:[%s793 + $0xa9] sm:$0xff] %vm737, %v719
      %809 = vst.msk [vmem:[%s793 + $0xb1] sm:$0xff] %vm737, %v720
      %810 = vst.msk [vmem:[%s793 + $0xc1] sm:$0xff] %vm737, %v721
      %811 = vst.msk [vmem:[%s793 + $0xc9] sm:$0xff] %vm737, %v722
      %812 = vst.msk [vmem:[%s793 + $0xd9] sm:$0xff] %vm737, %v723
      %813 = vst.msk [vmem:[%s793 + $0xe1] sm:$0xff] %vm737, %v724
      %814 = vst.msk [vmem:[%s793 + $0xf1] sm:$0xff] %vm737, %v725
      %815 = vst.msk [vmem:[%s793 + $0xf9] sm:$0xff] %vm737, %v726
      %816 = vst.msk [vmem:[%s793 + $0x109] sm:$0xff] %vm737, %v727
      %817 = vst.msk [vmem:[%s793 + $0x111] sm:$0xff] %vm737, %v728
      %818 = vst.msk [vmem:[%s793 + $0x121] sm:$0xff] %vm737, %v729
      %819 = vst.msk [vmem:[%s793 + $0x129] sm:$0xff] %vm737, %v730
      %820 = vst.msk [vmem:[%s793 + $0x139] sm:$0xff] %vm737, %v731
      %821 = vst.msk [vmem:[%s793 + $0x141] sm:$0xff] %vm737, %v732
      %822 = vst.msk [vmem:[%s793 + $0x151] sm:$0xff] %vm737, %v733
      %823 = vst.msk [vmem:[%s793 + $0x159] sm:$0xff] %vm737, %v734
      %824 = vst.msk [vmem:[%s793 + $0x169] sm:$0xff] %vm737, %v735
      %825 = vst.msk [vmem:[%s793 + $0x171] sm:$0xff] %vm737, %v736
      %v826 = vld [vmem:[#allocation2] sm:$0xff]
      %v827 = vld [vmem:[#allocation2 + $0x8] sm:$0xff]
      %v828 = vld [vmem:[#allocation2 + $0x18] sm:$0xff]
      %v829 = vld [vmem:[#allocation2 + $0x20] sm:$0xff]
      %v830 = vld [vmem:[#allocation2 + $0x30] sm:$0xff]
      %v831 = vld [vmem:[#allocation2 + $0x38] sm:$0xff]
      %v832 = vld [vmem:[#allocation2 + $0x48] sm:$0xff]
      %v833 = vld [vmem:[#allocation2 + $0x50] sm:$0xff]
      %v834 = vld [vmem:[#allocation2 + $0x60] sm:$0xff]
      %v835 = vld [vmem:[#allocation2 + $0x68] sm:$0xff]
      %v836 = vld [vmem:[#allocation2 + $0x78] sm:$0xff]
      %v837 = vld [vmem:[#allocation2 + $0x80] sm:$0xff]
      %v838 = vld [vmem:[#allocation2 + $0x90] sm:$0xff]
      %v839 = vld [vmem:[#allocation2 + $0x98] sm:$0xff]
      %v840 = vld [vmem:[#allocation2 + $0xa8] sm:$0xff]
      %v841 = vld [vmem:[#allocation2 + $0xb0] sm:$0xff]
      %v842 = vld [vmem:[#allocation2 + $0xc0] sm:$0xff]
      %v843 = vld [vmem:[#allocation2 + $0xc8] sm:$0xff]
      %v844 = vld [vmem:[#allocation2 + $0xd8] sm:$0xff]
      %v845 = vld [vmem:[#allocation2 + $0xe0] sm:$0xff]
      %v846 = vld [vmem:[#allocation2 + $0xf0] sm:$0xff]
      %v847 = vld [vmem:[#allocation2 + $0xf8] sm:$0xff]
      %v848 = vld [vmem:[#allocation2 + $0x108] sm:$0xff]
      %v849 = vld [vmem:[#allocation2 + $0x110] sm:$0xff]
      %v850 = vld [vmem:[#allocation2 + $0x120] sm:$0xff]
      %v851 = vld [vmem:[#allocation2 + $0x128] sm:$0xff]
      %v852 = vld [vmem:[#allocation2 + $0x138] sm:$0xff]
      %v853 = vld [vmem:[#allocation2 + $0x140] sm:$0xff]
      %v854 = vld [vmem:[#allocation2 + $0x150] sm:$0xff]
      %v855 = vld [vmem:[#allocation2 + $0x158] sm:$0xff]
      %v856 = vld [vmem:[#allocation2 + $0x168] sm:$0xff]
      %v857 = vld [vmem:[#allocation2 + $0x170] sm:$0xff]
      %v858 = vpack.c.bf16 %v827, %v826
      %v859 = vpack.c.bf16 %v829, %v828
      %v860 = vpack.c.bf16 %v831, %v830
      %v861 = vpack.c.bf16 %v833, %v832
      %v862 = vpack.c.bf16 %v835, %v834
      %v863 = vpack.c.bf16 %v837, %v836
      %v864 = vpack.c.bf16 %v839, %v838
      %v865 = vpack.c.bf16 %v841, %v840
      %v866 = vpack.c.bf16 %v843, %v842
      %v867 = vpack.c.bf16 %v845, %v844
      %v868 = vpack.c.bf16 %v847, %v846
      %v869 = vpack.c.bf16 %v849, %v848
      %v870 = vpack.c.bf16 %v851, %v850
      %v871 = vpack.c.bf16 %v853, %v852
      %v872 = vpack.c.bf16 %v855, %v854
      %v873 = vpack.c.bf16 %v857, %v856
      %874 = vst.msk [vmem:[#allocation3] sm:$0xff] %vm737, %v858
      %875 = vst.msk [vmem:[#allocation3 + $0x8] sm:$0xff] %vm737, %v859
      %876 = vst.msk [vmem:[#allocation3 + $0x10] sm:$0xff] %vm737, %v860
      %877 = vst.msk [vmem:[#allocation3 + $0x18] sm:$0xff] %vm737, %v861
      %878 = vst.msk [vmem:[#allocation3 + $0x20] sm:$0xff] %vm737, %v862
      %879 = vst.msk [vmem:[#allocation3 + $0x28] sm:$0xff] %vm737, %v863
      %880 = vst.msk [vmem:[#allocation3 + $0x30] sm:$0xff] %vm737, %v864
      %881 = vst.msk [vmem:[#allocation3 + $0x38] sm:$0xff] %vm737, %v865
      %882 = vst.msk [vmem:[#allocation3 + $0x40] sm:$0xff] %vm737, %v866
      %883 = vst.msk [vmem:[#allocation3 + $0x48] sm:$0xff] %vm737, %v867
      %884 = vst.msk [vmem:[#allocation3 + $0x50] sm:$0xff] %vm737, %v868
      %885 = vst.msk [vmem:[#allocation3 + $0x58] sm:$0xff] %vm737, %v869
      %886 = vst.msk [vmem:[#allocation3 + $0x60] sm:$0xff] %vm737, %v870
      %887 = vst.msk [vmem:[#allocation3 + $0x68] sm:$0xff] %vm737, %v871
      %888 = vst.msk [vmem:[#allocation3 + $0x70] sm:$0xff] %vm737, %v872
      %889 = vst.msk [vmem:[#allocation3 + $0x78] sm:$0xff] %vm737, %v873
      %v890 = vld [vmem:[#allocation2 + $0x1] sm:$0xff]
      %v891 = vld [vmem:[#allocation2 + $0x9] sm:$0xff]
      %v892 = vld [vmem:[#allocation2 + $0x19] sm:$0xff]
      %v893 = vld [vmem:[#allocation2 + $0x21] sm:$0xff]
      %v894 = vld [vmem:[#allocation2 + $0x31] sm:$0xff]
      %v895 = vld [vmem:[#allocation2 + $0x39] sm:$0xff]
      %v896 = vld [vmem:[#allocation2 + $0x49] sm:$0xff]
      %v897 = vld [vmem:[#allocation2 + $0x51] sm:$0xff]
      %v898 = vld [vmem:[#allocation2 + $0x61] sm:$0xff]
      %v899 = vld [vmem:[#allocation2 + $0x69] sm:$0xff]
      %v900 = vld [vmem:[#allocation2 + $0x79] sm:$0xff]
      %v901 = vld [vmem:[#allocation2 + $0x81] sm:$0xff]
      %v902 = vld [vmem:[#allocation2 + $0x91] sm:$0xff]
      %v903 = vld [vmem:[#allocation2 + $0x99] sm:$0xff]
      %v904 = vld [vmem:[#allocation2 + $0xa9] sm:$0xff]
      %v905 = vld [vmem:[#allocation2 + $0xb1] sm:$0xff]
      %v906 = vld [vmem:[#allocation2 + $0xc1] sm:$0xff]
      %v907 = vld [vmem:[#allocation2 + $0xc9] sm:$0xff]
      %v908 = vld [vmem:[#allocation2 + $0xd9] sm:$0xff]
      %v909 = vld [vmem:[#allocation2 + $0xe1] sm:$0xff]
      %v910 = vld [vmem:[#allocation2 + $0xf1] sm:$0xff]
      %v911 = vld [vmem:[#allocation2 + $0xf9] sm:$0xff]
      %v912 = vld [vmem:[#allocation2 + $0x109] sm:$0xff]
      %v913 = vld [vmem:[#allocation2 + $0x111] sm:$0xff]
      %v914 = vld [vmem:[#allocation2 + $0x121] sm:$0xff]
      %v915 = vld [vmem:[#allocation2 + $0x129] sm:$0xff]
      %v916 = vld [vmem:[#allocation2 + $0x139] sm:$0xff]
      %v917 = vld [vmem:[#allocation2 + $0x141] sm:$0xff]
      %v918 = vld [vmem:[#allocation2 + $0x151] sm:$0xff]
      %v919 = vld [vmem:[#allocation2 + $0x159] sm:$0xff]
      %v920 = vld [vmem:[#allocation2 + $0x169] sm:$0xff]
      %v921 = vld [vmem:[#allocation2 + $0x171] sm:$0xff]
      %v922 = vpack.c.bf16 %v891, %v890
      %v923 = vpack.c.bf16 %v893, %v892
      %v924 = vpack.c.bf16 %v895, %v894
      %v925 = vpack.c.bf16 %v897, %v896
      %v926 = vpack.c.bf16 %v899, %v898
      %v927 = vpack.c.bf16 %v901, %v900
      %v928 = vpack.c.bf16 %v903, %v902
      %v929 = vpack.c.bf16 %v905, %v904
      %v930 = vpack.c.bf16 %v907, %v906
      %v931 = vpack.c.bf16 %v909, %v908
      %v932 = vpack.c.bf16 %v911, %v910
      %v933 = vpack.c.bf16 %v913, %v912
      %v934 = vpack.c.bf16 %v915, %v914
      %v935 = vpack.c.bf16 %v917, %v916
      %v936 = vpack.c.bf16 %v919, %v918
      %v937 = vpack.c.bf16 %v921, %v920
      %954 = vrot.lane.b32.xlu0 %v922, 4
      %v955 = vpop.permute.xlu0 %954
      %956 = vrot.lane.b32.xlu0 %v923, 4
      %v957 = vpop.permute.xlu0 %956
      %958 = vrot.lane.b32.xlu0 %v924, 4
      %v959 = vpop.permute.xlu0 %958
      %960 = vrot.lane.b32.xlu0 %v925, 4
      %v961 = vpop.permute.xlu0 %960
      %962 = vrot.lane.b32.xlu0 %v926, 4
      %v963 = vpop.permute.xlu0 %962
      %964 = vrot.lane.b32.xlu0 %v927, 4
      %v965 = vpop.permute.xlu0 %964
      %966 = vrot.lane.b32.xlu0 %v928, 4
      %v967 = vpop.permute.xlu0 %966
      %968 = vrot.lane.b32.xlu0 %v929, 4
      %v969 = vpop.permute.xlu0 %968
      %970 = vrot.lane.b32.xlu0 %v930, 4
      %v971 = vpop.permute.xlu0 %970
      %972 = vrot.lane.b32.xlu0 %v931, 4
      %v973 = vpop.permute.xlu0 %972
      %974 = vrot.lane.b32.xlu0 %v932, 4
      %v975 = vpop.permute.xlu0 %974
      %976 = vrot.lane.b32.xlu0 %v933, 4
      %v977 = vpop.permute.xlu0 %976
      %978 = vrot.lane.b32.xlu0 %v934, 4
      %v979 = vpop.permute.xlu0 %978
      %980 = vrot.lane.b32.xlu0 %v935, 4
      %v981 = vpop.permute.xlu0 %980
      %982 = vrot.lane.b32.xlu0 %v936, 4
      %v983 = vpop.permute.xlu0 %982
      %984 = vrot.lane.b32.xlu0 %v937, 4
      %v985 = vpop.permute.xlu0 %984
      %vm1002 = vcmask 64544
      %1003 = vst.msk [vmem:[#allocation3] sm:$0xff] %vm1002, %v955
      %1004 = vst.msk [vmem:[#allocation3 + $0x8] sm:$0xff] %vm1002, %v957
      %1005 = vst.msk [vmem:[#allocation3 + $0x10] sm:$0xff] %vm1002, %v959
      %1006 = vst.msk [vmem:[#allocation3 + $0x18] sm:$0xff] %vm1002, %v961
      %1007 = vst.msk [vmem:[#allocation3 + $0x20] sm:$0xff] %vm1002, %v963
      %1008 = vst.msk [vmem:[#allocation3 + $0x28] sm:$0xff] %vm1002, %v965
      %1009 = vst.msk [vmem:[#allocation3 + $0x30] sm:$0xff] %vm1002, %v967
      %1010 = vst.msk [vmem:[#allocation3 + $0x38] sm:$0xff] %vm1002, %v969
      %1011 = vst.msk [vmem:[#allocation3 + $0x40] sm:$0xff] %vm1002, %v971
      %1012 = vst.msk [vmem:[#allocation3 + $0x48] sm:$0xff] %vm1002, %v973
      %1013 = vst.msk [vmem:[#allocation3 + $0x50] sm:$0xff] %vm1002, %v975
      %1014 = vst.msk [vmem:[#allocation3 + $0x58] sm:$0xff] %vm1002, %v977
      %1015 = vst.msk [vmem:[#allocation3 + $0x60] sm:$0xff] %vm1002, %v979
      %1016 = vst.msk [vmem:[#allocation3 + $0x68] sm:$0xff] %vm1002, %v981
      %1017 = vst.msk [vmem:[#allocation3 + $0x70] sm:$0xff] %vm1002, %v983
      %1018 = vst.msk [vmem:[#allocation3 + $0x78] sm:$0xff] %vm1002, %v985
      %v1019 = vld [vmem:[#allocation2 + $0x2] sm:$0xff]
      %v1020 = vld [vmem:[#allocation2 + $0xa] sm:$0xff]
      %v1021 = vld [vmem:[#allocation2 + $0x1a] sm:$0xff]
      %v1022 = vld [vmem:[#allocation2 + $0x22] sm:$0xff]
      %v1023 = vld [vmem:[#allocation2 + $0x32] sm:$0xff]
      %v1024 = vld [vmem:[#allocation2 + $0x3a] sm:$0xff]
      %v1025 = vld [vmem:[#allocation2 + $0x4a] sm:$0xff]
      %v1026 = vld [vmem:[#allocation2 + $0x52] sm:$0xff]
      %v1027 = vld [vmem:[#allocation2 + $0x62] sm:$0xff]
      %v1028 = vld [vmem:[#allocation2 + $0x6a] sm:$0xff]
      %v1029 = vld [vmem:[#allocation2 + $0x7a] sm:$0xff]
      %v1030 = vld [vmem:[#allocation2 + $0x82] sm:$0xff]
      %v1031 = vld [vmem:[#allocation2 + $0x92] sm:$0xff]
      %v1032 = vld [vmem:[#allocation2 + $0x9a] sm:$0xff]
      %v1033 = vld [vmem:[#allocation2 + $0xaa] sm:$0xff]
      %v1034 = vld [vmem:[#allocation2 + $0xb2] sm:$0xff]
      %v1035 = vld [vmem:[#allocation2 + $0xc2] sm:$0xff]
      %v1036 = vld [vmem:[#allocation2 + $0xca] sm:$0xff]
      %v1037 = vld [vmem:[#allocation2 + $0xda] sm:$0xff]
      %v1038 = vld [vmem:[#allocation2 + $0xe2] sm:$0xff]
      %v1039 = vld [vmem:[#allocation2 + $0xf2] sm:$0xff]
      %v1040 = vld [vmem:[#allocation2 + $0xfa] sm:$0xff]
      %v1041 = vld [vmem:[#allocation2 + $0x10a] sm:$0xff]
      %v1042 = vld [vmem:[#allocation2 + $0x112] sm:$0xff]
      %v1043 = vld [vmem:[#allocation2 + $0x122] sm:$0xff]
      %v1044 = vld [vmem:[#allocation2 + $0x12a] sm:$0xff]
      %v1045 = vld [vmem:[#allocation2 + $0x13a] sm:$0xff]
      %v1046 = vld [vmem:[#allocation2 + $0x142] sm:$0xff]
      %v1047 = vld [vmem:[#allocation2 + $0x152] sm:$0xff]
      %v1048 = vld [vmem:[#allocation2 + $0x15a] sm:$0xff]
      %v1049 = vld [vmem:[#allocation2 + $0x16a] sm:$0xff]
      %v1050 = vld [vmem:[#allocation2 + $0x172] sm:$0xff]
      %v1051 = vpack.c.bf16 %v1020, %v1019
      %v1052 = vpack.c.bf16 %v1022, %v1021
      %v1053 = vpack.c.bf16 %v1024, %v1023
      %v1054 = vpack.c.bf16 %v1026, %v1025
      %v1055 = vpack.c.bf16 %v1028, %v1027
      %v1056 = vpack.c.bf16 %v1030, %v1029
      %v1057 = vpack.c.bf16 %v1032, %v1031
      %v1058 = vpack.c.bf16 %v1034, %v1033
      %v1059 = vpack.c.bf16 %v1036, %v1035
      %v1060 = vpack.c.bf16 %v1038, %v1037
      %v1061 = vpack.c.bf16 %v1040, %v1039
      %v1062 = vpack.c.bf16 %v1042, %v1041
      %v1063 = vpack.c.bf16 %v1044, %v1043
      %v1064 = vpack.c.bf16 %v1046, %v1045
      %v1065 = vpack.c.bf16 %v1048, %v1047
      %v1066 = vpack.c.bf16 %v1050, %v1049
      %1083 = vrot.lane.b32.xlu0 %v1051, 8
      %v1084 = vpop.permute.xlu0 %1083
      %1085 = vrot.lane.b32.xlu0 %v1052, 8
      %v1086 = vpop.permute.xlu0 %1085
      %1087 = vrot.lane.b32.xlu0 %v1053, 8
      %v1088 = vpop.permute.xlu0 %1087
      %1089 = vrot.lane.b32.xlu0 %v1054, 8
      %v1090 = vpop.permute.xlu0 %1089
      %1091 = vrot.lane.b32.xlu0 %v1055, 8
      %v1092 = vpop.permute.xlu0 %1091
      %1093 = vrot.lane.b32.xlu0 %v1056, 8
      %v1094 = vpop.permute.xlu0 %1093
      %1095 = vrot.lane.b32.xlu0 %v1057, 8
      %v1096 = vpop.permute.xlu0 %1095
      %1097 = vrot.lane.b32.xlu0 %v1058, 8
      %v1098 = vpop.permute.xlu0 %1097
      %1099 = vrot.lane.b32.xlu0 %v1059, 8
      %v1100 = vpop.permute.xlu0 %1099
      %1101 = vrot.lane.b32.xlu0 %v1060, 8
      %v1102 = vpop.permute.xlu0 %1101
      %1103 = vrot.lane.b32.xlu0 %v1061, 8
      %v1104 = vpop.permute.xlu0 %1103
      %1105 = vrot.lane.b32.xlu0 %v1062, 8
      %v1106 = vpop.permute.xlu0 %1105
      %1107 = vrot.lane.b32.xlu0 %v1063, 8
      %v1108 = vpop.permute.xlu0 %1107
      %1109 = vrot.lane.b32.xlu0 %v1064, 8
      %v1110 = vpop.permute.xlu0 %1109
      %1111 = vrot.lane.b32.xlu0 %v1065, 8
      %v1112 = vpop.permute.xlu0 %1111
      %1113 = vrot.lane.b32.xlu0 %v1066, 8
      %v1114 = vpop.permute.xlu0 %1113
      %vm1131 = vcmask 97344
      %1132 = vst.msk [vmem:[#allocation3] sm:$0xff] %vm1131, %v1084
      %1133 = vst.msk [vmem:[#allocation3 + $0x8] sm:$0xff] %vm1131, %v1086
      %1134 = vst.msk [vmem:[#allocation3 + $0x10] sm:$0xff] %vm1131, %v1088
      %1135 = vst.msk [vmem:[#allocation3 + $0x18] sm:$0xff] %vm1131, %v1090
      %1136 = vst.msk [vmem:[#allocation3 + $0x20] sm:$0xff] %vm1131, %v1092
      %1137 = vst.msk [vmem:[#allocation3 + $0x28] sm:$0xff] %vm1131, %v1094
      %1138 = vst.msk [vmem:[#allocation3 + $0x30] sm:$0xff] %vm1131, %v1096
      %1139 = vst.msk [vmem:[#allocation3 + $0x38] sm:$0xff] %vm1131, %v1098
      %1140 = vst.msk [vmem:[#allocation3 + $0x40] sm:$0xff] %vm1131, %v1100
      %1141 = vst.msk [vmem:[#allocation3 + $0x48] sm:$0xff] %vm1131, %v1102
      %1142 = vst.msk [vmem:[#allocation3 + $0x50] sm:$0xff] %vm1131, %v1104
      %1143 = vst.msk [vmem:[#allocation3 + $0x58] sm:$0xff] %vm1131, %v1106
      %1144 = vst.msk [vmem:[#allocation3 + $0x60] sm:$0xff] %vm1131, %v1108
      %1145 = vst.msk [vmem:[#allocation3 + $0x68] sm:$0xff] %vm1131, %v1110
      %1146 = vst.msk [vmem:[#allocation3 + $0x70] sm:$0xff] %vm1131, %v1112
      %1147 = vst.msk [vmem:[#allocation3 + $0x78] sm:$0xff] %vm1131, %v1114
      %v1148 = vld [vmem:[%s793] sm:$0xff]
      %v1149 = vld [vmem:[%s793 + $0x8] sm:$0xff]
      %v1150 = vld [vmem:[%s793 + $0x18] sm:$0xff]
      %v1151 = vld [vmem:[%s793 + $0x20] sm:$0xff]
      %v1152 = vld [vmem:[%s793 + $0x30] sm:$0xff]
      %v1153 = vld [vmem:[%s793 + $0x38] sm:$0xff]
      %v1154 = vld [vmem:[%s793 + $0x48] sm:$0xff]
      %v1155 = vld [vmem:[%s793 + $0x50] sm:$0xff]
      %v1156 = vld [vmem:[%s793 + $0x60] sm:$0xff]
      %v1157 = vld [vmem:[%s793 + $0x68] sm:$0xff]
      %v1158 = vld [vmem:[%s793 + $0x78] sm:$0xff]
      %v1159 = vld [vmem:[%s793 + $0x80] sm:$0xff]
      %v1160 = vld [vmem:[%s793 + $0x90] sm:$0xff]
      %v1161 = vld [vmem:[%s793 + $0x98] sm:$0xff]
      %v1162 = vld [vmem:[%s793 + $0xa8] sm:$0xff]
      %v1163 = vld [vmem:[%s793 + $0xb0] sm:$0xff]
      %v1164 = vld [vmem:[%s793 + $0xc0] sm:$0xff]
      %v1165 = vld [vmem:[%s793 + $0xc8] sm:$0xff]
      %v1166 = vld [vmem:[%s793 + $0xd8] sm:$0xff]
      %v1167 = vld [vmem:[%s793 + $0xe0] sm:$0xff]
      %v1168 = vld [vmem:[%s793 + $0xf0] sm:$0xff]
      %v1169 = vld [vmem:[%s793 + $0xf8] sm:$0xff]
      %v1170 = vld [vmem:[%s793 + $0x108] sm:$0xff]
      %v1171 = vld [vmem:[%s793 + $0x110] sm:$0xff]
      %v1172 = vld [vmem:[%s793 + $0x120] sm:$0xff]
      %v1173 = vld [vmem:[%s793 + $0x128] sm:$0xff]
      %v1174 = vld [vmem:[%s793 + $0x138] sm:$0xff]
      %v1175 = vld [vmem:[%s793 + $0x140] sm:$0xff]
      %v1176 = vld [vmem:[%s793 + $0x150] sm:$0xff]
      %v1177 = vld [vmem:[%s793 + $0x158] sm:$0xff]
      %v1178 = vld [vmem:[%s793 + $0x168] sm:$0xff]
      %v1179 = vld [vmem:[%s793 + $0x170] sm:$0xff]
      %v1180 = vpack.c.bf16 %v1149, %v1148
      %v1181 = vpack.c.bf16 %v1151, %v1150
      %v1182 = vpack.c.bf16 %v1153, %v1152
      %v1183 = vpack.c.bf16 %v1155, %v1154
      %v1184 = vpack.c.bf16 %v1157, %v1156
      %v1185 = vpack.c.bf16 %v1159, %v1158
      %v1186 = vpack.c.bf16 %v1161, %v1160
      %v1187 = vpack.c.bf16 %v1163, %v1162
      %v1188 = vpack.c.bf16 %v1165, %v1164
      %v1189 = vpack.c.bf16 %v1167, %v1166
      %v1190 = vpack.c.bf16 %v1169, %v1168
      %v1191 = vpack.c.bf16 %v1171, %v1170
      %v1192 = vpack.c.bf16 %v1173, %v1172
      %v1193 = vpack.c.bf16 %v1175, %v1174
      %v1194 = vpack.c.bf16 %v1177, %v1176
      %v1195 = vpack.c.bf16 %v1179, %v1178
      %1212 = vrot.lane.b32.xlu0 %v1180, 12
      %v1213 = vpop.permute.xlu0 %1212
      %1214 = vrot.lane.b32.xlu0 %v1181, 12
      %v1215 = vpop.permute.xlu0 %1214
      %1216 = vrot.lane.b32.xlu0 %v1182, 12
      %v1217 = vpop.permute.xlu0 %1216
      %1218 = vrot.lane.b32.xlu0 %v1183, 12
      %v1219 = vpop.permute.xlu0 %1218
      %1220 = vrot.lane.b32.xlu0 %v1184, 12
      %v1221 = vpop.permute.xlu0 %1220
      %1222 = vrot.lane.b32.xlu0 %v1185, 12
      %v1223 = vpop.permute.xlu0 %1222
      %1224 = vrot.lane.b32.xlu0 %v1186, 12
      %v1225 = vpop.permute.xlu0 %1224
      %1226 = vrot.lane.b32.xlu0 %v1187, 12
      %v1227 = vpop.permute.xlu0 %1226
      %1228 = vrot.lane.b32.xlu0 %v1188, 12
      %v1229 = vpop.permute.xlu0 %1228
      %1230 = vrot.lane.b32.xlu0 %v1189, 12
      %v1231 = vpop.permute.xlu0 %1230
      %1232 = vrot.lane.b32.xlu0 %v1190, 12
      %v1233 = vpop.permute.xlu0 %1232
      %1234 = vrot.lane.b32.xlu0 %v1191, 12
      %v1235 = vpop.permute.xlu0 %1234
      %1236 = vrot.lane.b32.xlu0 %v1192, 12
      %v1237 = vpop.permute.xlu0 %1236
      %1238 = vrot.lane.b32.xlu0 %v1193, 12
      %v1239 = vpop.permute.xlu0 %1238
      %1240 = vrot.lane.b32.xlu0 %v1194, 12
      %v1241 = vpop.permute.xlu0 %1240
      %1242 = vrot.lane.b32.xlu0 %v1195, 12
      %v1243 = vpop.permute.xlu0 %1242
      %vm1260 = vcmask 130144
      %1261 = vst.msk [vmem:[#allocation3] sm:$0xff] %vm1260, %v1213
      %1262 = vst.msk [vmem:[#allocation3 + $0x8] sm:$0xff] %vm1260, %v1215
      %1263 = vst.msk [vmem:[#allocation3 + $0x10] sm:$0xff] %vm1260, %v1217
      %1264 = vst.msk [vmem:[#allocation3 + $0x18] sm:$0xff] %vm1260, %v1219
      %1265 = vst.msk [vmem:[#allocation3 + $0x20] sm:$0xff] %vm1260, %v1221
      %1266 = vst.msk [vmem:[#allocation3 + $0x28] sm:$0xff] %vm1260, %v1223
      %1267 = vst.msk [vmem:[#allocation3 + $0x30] sm:$0xff] %vm1260, %v1225
      %1268 = vst.msk [vmem:[#allocation3 + $0x38] sm:$0xff] %vm1260, %v1227
      %1269 = vst.msk [vmem:[#allocation3 + $0x40] sm:$0xff] %vm1260, %v1229
      %1270 = vst.msk [vmem:[#allocation3 + $0x48] sm:$0xff] %vm1260, %v1231
      %1271 = vst.msk [vmem:[#allocation3 + $0x50] sm:$0xff] %vm1260, %v1233
      %1272 = vst.msk [vmem:[#allocation3 + $0x58] sm:$0xff] %vm1260, %v1235
      %1273 = vst.msk [vmem:[#allocation3 + $0x60] sm:$0xff] %vm1260, %v1237
      %1274 = vst.msk [vmem:[#allocation3 + $0x68] sm:$0xff] %vm1260, %v1239
      %1275 = vst.msk [vmem:[#allocation3 + $0x70] sm:$0xff] %vm1260, %v1241
      %1276 = vst.msk [vmem:[#allocation3 + $0x78] sm:$0xff] %vm1260, %v1243
      %v1277 = vld [vmem:[%s793 + $0x1] sm:$0xff]
      %v1278 = vld [vmem:[%s793 + $0x9] sm:$0xff]
      %v1279 = vld [vmem:[%s793 + $0x19] sm:$0xff]
      %v1280 = vld [vmem:[%s793 + $0x21] sm:$0xff]
      %v1281 = vld [vmem:[%s793 + $0x31] sm:$0xff]
      %v1282 = vld [vmem:[%s793 + $0x39] sm:$0xff]
      %v1283 = vld [vmem:[%s793 + $0x49] sm:$0xff]
      %v1284 = vld [vmem:[%s793 + $0x51] sm:$0xff]
      %v1285 = vld [vmem:[%s793 + $0x61] sm:$0xff]
      %v1286 = vld [vmem:[%s793 + $0x69] sm:$0xff]
      %v1287 = vld [vmem:[%s793 + $0x79] sm:$0xff]
      %v1288 = vld [vmem:[%s793 + $0x81] sm:$0xff]
      %v1289 = vld [vmem:[%s793 + $0x91] sm:$0xff]
      %v1290 = vld [vmem:[%s793 + $0x99] sm:$0xff]
      %v1291 = vld [vmem:[%s793 + $0xa9] sm:$0xff]
      %v1292 = vld [vmem:[%s793 + $0xb1] sm:$0xff]
      %v1293 = vld [vmem:[%s793 + $0xc1] sm:$0xff]
      %v1294 = vld [vmem:[%s793 + $0xc9] sm:$0xff]
      %v1295 = vld [vmem:[%s793 + $0xd9] sm:$0xff]
      %v1296 = vld [vmem:[%s793 + $0xe1] sm:$0xff]
      %v1297 = vld [vmem:[%s793 + $0xf1] sm:$0xff]
      %v1298 = vld [vmem:[%s793 + $0xf9] sm:$0xff]
      %v1299 = vld [vmem:[%s793 + $0x109] sm:$0xff]
      %v1300 = vld [vmem:[%s793 + $0x111] sm:$0xff]
      %v1301 = vld [vmem:[%s793 + $0x121] sm:$0xff]
      %v1302 = vld [vmem:[%s793 + $0x129] sm:$0xff]
      %v1303 = vld [vmem:[%s793 + $0x139] sm:$0xff]
      %v1304 = vld [vmem:[%s793 + $0x141] sm:$0xff]
      %v1305 = vld [vmem:[%s793 + $0x151] sm:$0xff]
      %v1306 = vld [vmem:[%s793 + $0x159] sm:$0xff]
      %v1307 = vld [vmem:[%s793 + $0x169] sm:$0xff]
      %v1308 = vld [vmem:[%s793 + $0x171] sm:$0xff]
      %v1309 = vpack.c.bf16 %v1278, %v1277
      %v1310 = vpack.c.bf16 %v1280, %v1279
      %v1311 = vpack.c.bf16 %v1282, %v1281
      %v1312 = vpack.c.bf16 %v1284, %v1283
      %v1313 = vpack.c.bf16 %v1286, %v1285
      %v1314 = vpack.c.bf16 %v1288, %v1287
      %v1315 = vpack.c.bf16 %v1290, %v1289
      %v1316 = vpack.c.bf16 %v1292, %v1291
      %v1317 = vpack.c.bf16 %v1294, %v1293
      %v1318 = vpack.c.bf16 %v1296, %v1295
      %v1319 = vpack.c.bf16 %v1298, %v1297
      %v1320 = vpack.c.bf16 %v1300, %v1299
      %v1321 = vpack.c.bf16 %v1302, %v1301
      %v1322 = vpack.c.bf16 %v1304, %v1303
      %v1323 = vpack.c.bf16 %v1306, %v1305
      %v1324 = vpack.c.bf16 %v1308, %v1307
      %1341 = vrot.lane.b32.xlu0 %v1309, 16
      %v1342 = vpop.permute.xlu0 %1341
      %1343 = vrot.lane.b32.xlu0 %v1310, 16
      %v1344 = vpop.permute.xlu0 %1343
      %1345 = vrot.lane.b32.xlu0 %v1311, 16
      %v1346 = vpop.permute.xlu0 %1345
      %1347 = vrot.lane.b32.xlu0 %v1312, 16
      %v1348 = vpop.permute.xlu0 %1347
      %1349 = vrot.lane.b32.xlu0 %v1313, 16
      %v1350 = vpop.permute.xlu0 %1349
      %1351 = vrot.lane.b32.xlu0 %v1314, 16
      %v1352 = vpop.permute.xlu0 %1351
      %1353 = vrot.lane.b32.xlu0 %v1315, 16
      %v1354 = vpop.permute.xlu0 %1353
      %1355 = vrot.lane.b32.xlu0 %v1316, 16
      %v1356 = vpop.permute.xlu0 %1355
      %1357 = vrot.lane.b32.xlu0 %v1317, 16
      %v1358 = vpop.permute.xlu0 %1357
      %1359 = vrot.lane.b32.xlu0 %v1318, 16
      %v1360 = vpop.permute.xlu0 %1359
      %1361 = vrot.lane.b32.xlu0 %v1319, 16
      %v1362 = vpop.permute.xlu0 %1361
      %1363 = vrot.lane.b32.xlu0 %v1320, 16
      %v1364 = vpop.permute.xlu0 %1363
      %1365 = vrot.lane.b32.xlu0 %v1321, 16
      %v1366 = vpop.permute.xlu0 %1365
      %1367 = vrot.lane.b32.xlu0 %v1322, 16
      %v1368 = vpop.permute.xlu0 %1367
      %1369 = vrot.lane.b32.xlu0 %v1323, 16
      %v1370 = vpop.permute.xlu0 %1369
      %1371 = vrot.lane.b32.xlu0 %v1324, 16
      %v1372 = vpop.permute.xlu0 %1371
      %vm1389 = vcmask 162944
      %1390 = vst.msk [vmem:[#allocation3] sm:$0xff] %vm1389, %v1342
      %1391 = vst.msk [vmem:[#allocation3 + $0x8] sm:$0xff] %vm1389, %v1344
      %1392 = vst.msk [vmem:[#allocation3 + $0x10] sm:$0xff] %vm1389, %v1346
      %1393 = vst.msk [vmem:[#allocation3 + $0x18] sm:$0xff] %vm1389, %v1348
      %1394 = vst.msk [vmem:[#allocation3 + $0x20] sm:$0xff] %vm1389, %v1350
      %1395 = vst.msk [vmem:[#allocation3 + $0x28] sm:$0xff] %vm1389, %v1352
      %1396 = vst.msk [vmem:[#allocation3 + $0x30] sm:$0xff] %vm1389, %v1354
      %1397 = vst.msk [vmem:[#allocation3 + $0x38] sm:$0xff] %vm1389, %v1356
      %1398 = vst.msk [vmem:[#allocation3 + $0x40] sm:$0xff] %vm1389, %v1358
      %1399 = vst.msk [vmem:[#allocation3 + $0x48] sm:$0xff] %vm1389, %v1360
      %1400 = vst.msk [vmem:[#allocation3 + $0x50] sm:$0xff] %vm1389, %v1362
      %1401 = vst.msk [vmem:[#allocation3 + $0x58] sm:$0xff] %vm1389, %v1364
      %1402 = vst.msk [vmem:[#allocation3 + $0x60] sm:$0xff] %vm1389, %v1366
      %1403 = vst.msk [vmem:[#allocation3 + $0x68] sm:$0xff] %vm1389, %v1368
      %1404 = vst.msk [vmem:[#allocation3 + $0x70] sm:$0xff] %vm1389, %v1370
      %1405 = vst.msk [vmem:[#allocation3 + $0x78] sm:$0xff] %vm1389, %v1372
      %v1406 = vld [vmem:[%s793 + $0x2] sm:$0xff]
      %v1407 = vld [vmem:[%s793 + $0xa] sm:$0xff]
      %v1408 = vld [vmem:[%s793 + $0x1a] sm:$0xff]
      %v1409 = vld [vmem:[%s793 + $0x22] sm:$0xff]
      %v1410 = vld [vmem:[%s793 + $0x32] sm:$0xff]
      %v1411 = vld [vmem:[%s793 + $0x3a] sm:$0xff]
      %v1412 = vld [vmem:[%s793 + $0x4a] sm:$0xff]
      %v1413 = vld [vmem:[%s793 + $0x52] sm:$0xff]
      %v1414 = vld [vmem:[%s793 + $0x62] sm:$0xff]
      %v1415 = vld [vmem:[%s793 + $0x6a] sm:$0xff]
      %v1416 = vld [vmem:[%s793 + $0x7a] sm:$0xff]
      %v1417 = vld [vmem:[%s793 + $0x82] sm:$0xff]
      %v1418 = vld [vmem:[%s793 + $0x92] sm:$0xff]
      %v1419 = vld [vmem:[%s793 + $0x9a] sm:$0xff]
      %v1420 = vld [vmem:[%s793 + $0xaa] sm:$0xff]
      %v1421 = vld [vmem:[%s793 + $0xb2] sm:$0xff]
      %v1422 = vld [vmem:[%s793 + $0xc2] sm:$0xff]
      %v1423 = vld [vmem:[%s793 + $0xca] sm:$0xff]
      %v1424 = vld [vmem:[%s793 + $0xda] sm:$0xff]
      %v1425 = vld [vmem:[%s793 + $0xe2] sm:$0xff]
      %v1426 = vld [vmem:[%s793 + $0xf2] sm:$0xff]
      %v1427 = vld [vmem:[%s793 + $0xfa] sm:$0xff]
      %v1428 = vld [vmem:[%s793 + $0x10a] sm:$0xff]
      %v1429 = vld [vmem:[%s793 + $0x112] sm:$0xff]
      %v1430 = vld [vmem:[%s793 + $0x122] sm:$0xff]
      %v1431 = vld [vmem:[%s793 + $0x12a] sm:$0xff]
      %v1432 = vld [vmem:[%s793 + $0x13a] sm:$0xff]
      %v1433 = vld [vmem:[%s793 + $0x142] sm:$0xff]
      %v1434 = vld [vmem:[%s793 + $0x152] sm:$0xff]
      %v1435 = vld [vmem:[%s793 + $0x15a] sm:$0xff]
      %v1436 = vld [vmem:[%s793 + $0x16a] sm:$0xff]
      %v1437 = vld [vmem:[%s793 + $0x172] sm:$0xff]
      %v1438 = vpack.c.bf16 %v1407, %v1406
      %v1439 = vpack.c.bf16 %v1409, %v1408
      %v1440 = vpack.c.bf16 %v1411, %v1410
      %v1441 = vpack.c.bf16 %v1413, %v1412
      %v1442 = vpack.c.bf16 %v1415, %v1414
      %v1443 = vpack.c.bf16 %v1417, %v1416
      %v1444 = vpack.c.bf16 %v1419, %v1418
      %v1445 = vpack.c.bf16 %v1421, %v1420
      %v1446 = vpack.c.bf16 %v1423, %v1422
      %v1447 = vpack.c.bf16 %v1425, %v1424
      %v1448 = vpack.c.bf16 %v1427, %v1426
      %v1449 = vpack.c.bf16 %v1429, %v1428
      %v1450 = vpack.c.bf16 %v1431, %v1430
      %v1451 = vpack.c.bf16 %v1433, %v1432
      %v1452 = vpack.c.bf16 %v1435, %v1434
      %v1453 = vpack.c.bf16 %v1437, %v1436
      %1470 = vrot.lane.b32.xlu0 %v1438, 20
      %v1471 = vpop.permute.xlu0 %1470
      %1472 = vrot.lane.b32.xlu0 %v1439, 20
      %v1473 = vpop.permute.xlu0 %1472
      %1474 = vrot.lane.b32.xlu0 %v1440, 20
      %v1475 = vpop.permute.xlu0 %1474
      %1476 = vrot.lane.b32.xlu0 %v1441, 20
      %v1477 = vpop.permute.xlu0 %1476
      %1478 = vrot.lane.b32.xlu0 %v1442, 20
      %v1479 = vpop.permute.xlu0 %1478
      %1480 = vrot.lane.b32.xlu0 %v1443, 20
      %v1481 = vpop.permute.xlu0 %1480
      %1482 = vrot.lane.b32.xlu0 %v1444, 20
      %v1483 = vpop.permute.xlu0 %1482
      %1484 = vrot.lane.b32.xlu0 %v1445, 20
      %v1485 = vpop.permute.xlu0 %1484
      %1486 = vrot.lane.b32.xlu0 %v1446, 20
      %v1487 = vpop.permute.xlu0 %1486
      %1488 = vrot.lane.b32.xlu0 %v1447, 20
      %v1489 = vpop.permute.xlu0 %1488
      %1490 = vrot.lane.b32.xlu0 %v1448, 20
      %v1491 = vpop.permute.xlu0 %1490
      %1492 = vrot.lane.b32.xlu0 %v1449, 20
      %v1493 = vpop.permute.xlu0 %1492
      %1494 = vrot.lane.b32.xlu0 %v1450, 20
      %v1495 = vpop.permute.xlu0 %1494
      %1496 = vrot.lane.b32.xlu0 %v1451, 20
      %v1497 = vpop.permute.xlu0 %1496
      %1498 = vrot.lane.b32.xlu0 %v1452, 20
      %v1499 = vpop.permute.xlu0 %1498
      %1500 = vrot.lane.b32.xlu0 %v1453, 20
      %v1501 = vpop.permute.xlu0 %1500
      %vm1518 = vcmask 195744
      %1519 = vst.msk [vmem:[#allocation3] sm:$0xff] %vm1518, %v1471
      %1520 = vst.msk [vmem:[#allocation3 + $0x8] sm:$0xff] %vm1518, %v1473
      %1521 = vst.msk [vmem:[#allocation3 + $0x10] sm:$0xff] %vm1518, %v1475
      %1522 = vst.msk [vmem:[#allocation3 + $0x18] sm:$0xff] %vm1518, %v1477
      %1523 = vst.msk [vmem:[#allocation3 + $0x20] sm:$0xff] %vm1518, %v1479
      %1524 = vst.msk [vmem:[#allocation3 + $0x28] sm:$0xff] %vm1518, %v1481
      %1525 = vst.msk [vmem:[#allocation3 + $0x30] sm:$0xff] %vm1518, %v1483
      %1526 = vst.msk [vmem:[#allocation3 + $0x38] sm:$0xff] %vm1518, %v1485
      %1527 = vst.msk [vmem:[#allocation3 + $0x40] sm:$0xff] %vm1518, %v1487
      %1528 = vst.msk [vmem:[#allocation3 + $0x48] sm:$0xff] %vm1518, %v1489
      %1529 = vst.msk [vmem:[#allocation3 + $0x50] sm:$0xff] %vm1518, %v1491
      %1530 = vst.msk [vmem:[#allocation3 + $0x58] sm:$0xff] %vm1518, %v1493
      %1531 = vst.msk [vmem:[#allocation3 + $0x60] sm:$0xff] %vm1518, %v1495
      %1532 = vst.msk [vmem:[#allocation3 + $0x68] sm:$0xff] %vm1518, %v1497
      %1533 = vst.msk [vmem:[#allocation3 + $0x70] sm:$0xff] %vm1518, %v1499
      %1534 = vst.msk [vmem:[#allocation3 + $0x78] sm:$0xff] %vm1518, %v1501
      %s1535 = scalar_lea.vmem [#allocation2], 48
      %v1536 = vld [vmem:[%s1535] sm:$0xff]
      %v1537 = vld [vmem:[%s1535 + $0x8] sm:$0xff]
      %v1538 = vld [vmem:[%s1535 + $0x18] sm:$0xff]
      %v1539 = vld [vmem:[%s1535 + $0x20] sm:$0xff]
      %v1540 = vld [vmem:[%s1535 + $0x30] sm:$0xff]
      %v1541 = vld [vmem:[%s1535 + $0x38] sm:$0xff]
      %v1542 = vld [vmem:[%s1535 + $0x48] sm:$0xff]
      %v1543 = vld [vmem:[%s1535 + $0x50] sm:$0xff]
      %v1544 = vld [vmem:[%s1535 + $0x60] sm:$0xff]
      %v1545 = vld [vmem:[%s1535 + $0x68] sm:$0xff]
      %v1546 = vld [vmem:[%s1535 + $0x78] sm:$0xff]
      %v1547 = vld [vmem:[%s1535 + $0x80] sm:$0xff]
      %v1548 = vld [vmem:[%s1535 + $0x90] sm:$0xff]
      %v1549 = vld [vmem:[%s1535 + $0x98] sm:$0xff]
      %v1550 = vld [vmem:[%s1535 + $0xa8] sm:$0xff]
      %v1551 = vld [vmem:[%s1535 + $0xb0] sm:$0xff]
      %v1552 = vld [vmem:[%s1535 + $0xc0] sm:$0xff]
      %v1553 = vld [vmem:[%s1535 + $0xc8] sm:$0xff]
      %v1554 = vld [vmem:[%s1535 + $0xd8] sm:$0xff]
      %v1555 = vld [vmem:[%s1535 + $0xe0] sm:$0xff]
      %v1556 = vld [vmem:[%s1535 + $0xf0] sm:$0xff]
      %v1557 = vld [vmem:[%s1535 + $0xf8] sm:$0xff]
      %v1558 = vld [vmem:[%s1535 + $0x108] sm:$0xff]
      %v1559 = vld [vmem:[%s1535 + $0x110] sm:$0xff]
      %v1560 = vld [vmem:[%s1535 + $0x120] sm:$0xff]
      %v1561 = vld [vmem:[%s1535 + $0x128] sm:$0xff]
      %v1562 = vld [vmem:[%s1535 + $0x138] sm:$0xff]
      %v1563 = vld [vmem:[%s1535 + $0x140] sm:$0xff]
      %v1564 = vld [vmem:[%s1535 + $0x150] sm:$0xff]
      %v1565 = vld [vmem:[%s1535 + $0x158] sm:$0xff]
      %v1566 = vld [vmem:[%s1535 + $0x168] sm:$0xff]
      %v1567 = vld [vmem:[%s1535 + $0x170] sm:$0xff]
      %v1568 = vpack.c.bf16 %v1537, %v1536
      %v1569 = vpack.c.bf16 %v1539, %v1538
      %v1570 = vpack.c.bf16 %v1541, %v1540
      %v1571 = vpack.c.bf16 %v1543, %v1542
      %v1572 = vpack.c.bf16 %v1545, %v1544
      %v1573 = vpack.c.bf16 %v1547, %v1546
      %v1574 = vpack.c.bf16 %v1549, %v1548
      %v1575 = vpack.c.bf16 %v1551, %v1550
      %v1576 = vpack.c.bf16 %v1553, %v1552
      %v1577 = vpack.c.bf16 %v1555, %v1554
      %v1578 = vpack.c.bf16 %v1557, %v1556
      %v1579 = vpack.c.bf16 %v1559, %v1558
      %v1580 = vpack.c.bf16 %v1561, %v1560
      %v1581 = vpack.c.bf16 %v1563, %v1562
      %v1582 = vpack.c.bf16 %v1565, %v1564
      %v1583 = vpack.c.bf16 %v1567, %v1566
      %1600 = vrot.lane.b32.xlu0 %v1568, 24
      %v1601 = vpop.permute.xlu0 %1600
      %1602 = vrot.lane.b32.xlu0 %v1569, 24
      %v1603 = vpop.permute.xlu0 %1602
      %1604 = vrot.lane.b32.xlu0 %v1570, 24
      %v1605 = vpop.permute.xlu0 %1604
      %1606 = vrot.lane.b32.xlu0 %v1571, 24
      %v1607 = vpop.permute.xlu0 %1606
      %1608 = vrot.lane.b32.xlu0 %v1572, 24
      %v1609 = vpop.permute.xlu0 %1608
      %1610 = vrot.lane.b32.xlu0 %v1573, 24
      %v1611 = vpop.permute.xlu0 %1610
      %1612 = vrot.lane.b32.xlu0 %v1574, 24
      %v1613 = vpop.permute.xlu0 %1612
      %1614 = vrot.lane.b32.xlu0 %v1575, 24
      %v1615 = vpop.permute.xlu0 %1614
      %1616 = vrot.lane.b32.xlu0 %v1576, 24
      %v1617 = vpop.permute.xlu0 %1616
      %1618 = vrot.lane.b32.xlu0 %v1577, 24
      %v1619 = vpop.permute.xlu0 %1618
      %1620 = vrot.lane.b32.xlu0 %v1578, 24
      %v1621 = vpop.permute.xlu0 %1620
      %1622 = vrot.lane.b32.xlu0 %v1579, 24
      %v1623 = vpop.permute.xlu0 %1622
      %1624 = vrot.lane.b32.xlu0 %v1580, 24
      %v1625 = vpop.permute.xlu0 %1624
      %1626 = vrot.lane.b32.xlu0 %v1581, 24
      %v1627 = vpop.permute.xlu0 %1626
      %1628 = vrot.lane.b32.xlu0 %v1582, 24
      %v1629 = vpop.permute.xlu0 %1628
      %1630 = vrot.lane.b32.xlu0 %v1583, 24
      %v1631 = vpop.permute.xlu0 %1630
      %vm1648 = vcmask 228544
      %1649 = vst.msk [vmem:[#allocation3] sm:$0xff] %vm1648, %v1601
      %1650 = vst.msk [vmem:[#allocation3 + $0x8] sm:$0xff] %vm1648, %v1603
      %1651 = vst.msk [vmem:[#allocation3 + $0x10] sm:$0xff] %vm1648, %v1605
      %1652 = vst.msk [vmem:[#allocation3 + $0x18] sm:$0xff] %vm1648, %v1607
      %1653 = vst.msk [vmem:[#allocation3 + $0x20] sm:$0xff] %vm1648, %v1609
      %1654 = vst.msk [vmem:[#allocation3 + $0x28] sm:$0xff] %vm1648, %v1611
      %1655 = vst.msk [vmem:[#allocation3 + $0x30] sm:$0xff] %vm1648, %v1613
      %1656 = vst.msk [vmem:[#allocation3 + $0x38] sm:$0xff] %vm1648, %v1615
      %1657 = vst.msk [vmem:[#allocation3 + $0x40] sm:$0xff] %vm1648, %v1617
      %1658 = vst.msk [vmem:[#allocation3 + $0x48] sm:$0xff] %vm1648, %v1619
      %1659 = vst.msk [vmem:[#allocation3 + $0x50] sm:$0xff] %vm1648, %v1621
      %1660 = vst.msk [vmem:[#allocation3 + $0x58] sm:$0xff] %vm1648, %v1623
      %1661 = vst.msk [vmem:[#allocation3 + $0x60] sm:$0xff] %vm1648, %v1625
      %1662 = vst.msk [vmem:[#allocation3 + $0x68] sm:$0xff] %vm1648, %v1627
      %1663 = vst.msk [vmem:[#allocation3 + $0x70] sm:$0xff] %vm1648, %v1629
      %1664 = vst.msk [vmem:[#allocation3 + $0x78] sm:$0xff] %vm1648, %v1631
      %v1665 = vld [vmem:[%s1535 + $0x1] sm:$0xff]
      %v1666 = vld [vmem:[%s1535 + $0x9] sm:$0xff]
      %v1667 = vld [vmem:[%s1535 + $0x19] sm:$0xff]
      %v1668 = vld [vmem:[%s1535 + $0x21] sm:$0xff]
      %v1669 = vld [vmem:[%s1535 + $0x31] sm:$0xff]
      %v1670 = vld [vmem:[%s1535 + $0x39] sm:$0xff]
      %v1671 = vld [vmem:[%s1535 + $0x49] sm:$0xff]
      %v1672 = vld [vmem:[%s1535 + $0x51] sm:$0xff]
      %v1673 = vld [vmem:[%s1535 + $0x61] sm:$0xff]
      %v1674 = vld [vmem:[%s1535 + $0x69] sm:$0xff]
      %v1675 = vld [vmem:[%s1535 + $0x79] sm:$0xff]
      %v1676 = vld [vmem:[%s1535 + $0x81] sm:$0xff]
      %v1677 = vld [vmem:[%s1535 + $0x91] sm:$0xff]
      %v1678 = vld [vmem:[%s1535 + $0x99] sm:$0xff]
      %v1679 = vld [vmem:[%s1535 + $0xa9] sm:$0xff]
      %v1680 = vld [vmem:[%s1535 + $0xb1] sm:$0xff]
      %v1681 = vld [vmem:[%s1535 + $0xc1] sm:$0xff]
      %v1682 = vld [vmem:[%s1535 + $0xc9] sm:$0xff]
      %v1683 = vld [vmem:[%s1535 + $0xd9] sm:$0xff]
      %v1684 = vld [vmem:[%s1535 + $0xe1] sm:$0xff]
      %v1685 = vld [vmem:[%s1535 + $0xf1] sm:$0xff]
      %v1686 = vld [vmem:[%s1535 + $0xf9] sm:$0xff]
      %v1687 = vld [vmem:[%s1535 + $0x109] sm:$0xff]
      %v1688 = vld [vmem:[%s1535 + $0x111] sm:$0xff]
      %v1689 = vld [vmem:[%s1535 + $0x121] sm:$0xff]
      %v1690 = vld [vmem:[%s1535 + $0x129] sm:$0xff]
      %v1691 = vld [vmem:[%s1535 + $0x139] sm:$0xff]
      %v1692 = vld [vmem:[%s1535 + $0x141] sm:$0xff]
      %v1693 = vld [vmem:[%s1535 + $0x151] sm:$0xff]
      %v1694 = vld [vmem:[%s1535 + $0x159] sm:$0xff]
      %v1695 = vld [vmem:[%s1535 + $0x169] sm:$0xff]
      %v1696 = vld [vmem:[%s1535 + $0x171] sm:$0xff]
      %v1697 = vpack.c.bf16 %v1666, %v1665
      %v1698 = vpack.c.bf16 %v1668, %v1667
      %v1699 = vpack.c.bf16 %v1670, %v1669
      %v1700 = vpack.c.bf16 %v1672, %v1671
      %v1701 = vpack.c.bf16 %v1674, %v1673
      %v1702 = vpack.c.bf16 %v1676, %v1675
      %v1703 = vpack.c.bf16 %v1678, %v1677
      %v1704 = vpack.c.bf16 %v1680, %v1679
      %v1705 = vpack.c.bf16 %v1682, %v1681
      %v1706 = vpack.c.bf16 %v1684, %v1683
      %v1707 = vpack.c.bf16 %v1686, %v1685
      %v1708 = vpack.c.bf16 %v1688, %v1687
      %v1709 = vpack.c.bf16 %v1690, %v1689
      %v1710 = vpack.c.bf16 %v1692, %v1691
      %v1711 = vpack.c.bf16 %v1694, %v1693
      %v1712 = vpack.c.bf16 %v1696, %v1695
      %1729 = vrot.lane.b32.xlu0 %v1697, 28
      %v1730 = vpop.permute.xlu0 %1729
      %1731 = vrot.lane.b32.xlu0 %v1698, 28
      %v1732 = vpop.permute.xlu0 %1731
      %1733 = vrot.lane.b32.xlu0 %v1699, 28
      %v1734 = vpop.permute.xlu0 %1733
      %1735 = vrot.lane.b32.xlu0 %v1700, 28
      %v1736 = vpop.permute.xlu0 %1735
      %1737 = vrot.lane.b32.xlu0 %v1701, 28
      %v1738 = vpop.permute.xlu0 %1737
      %1739 = vrot.lane.b32.xlu0 %v1702, 28
      %v1740 = vpop.permute.xlu0 %1739
      %1741 = vrot.lane.b32.xlu0 %v1703, 28
      %v1742 = vpop.permute.xlu0 %1741
      %1743 = vrot.lane.b32.xlu0 %v1704, 28
      %v1744 = vpop.permute.xlu0 %1743
      %1745 = vrot.lane.b32.xlu0 %v1705, 28
      %v1746 = vpop.permute.xlu0 %1745
      %1747 = vrot.lane.b32.xlu0 %v1706, 28
      %v1748 = vpop.permute.xlu0 %1747
      %1749 = vrot.lane.b32.xlu0 %v1707, 28
      %v1750 = vpop.permute.xlu0 %1749
      %1751 = vrot.lane.b32.xlu0 %v1708, 28
      %v1752 = vpop.permute.xlu0 %1751
      %1753 = vrot.lane.b32.xlu0 %v1709, 28
      %v1754 = vpop.permute.xlu0 %1753
      %1755 = vrot.lane.b32.xlu0 %v1710, 28
      %v1756 = vpop.permute.xlu0 %1755
      %1757 = vrot.lane.b32.xlu0 %v1711, 28
      %v1758 = vpop.permute.xlu0 %1757
      %1759 = vrot.lane.b32.xlu0 %v1712, 28
      %v1760 = vpop.permute.xlu0 %1759
      %vm1777 = vcmask 261344
      %1778 = vst.msk [vmem:[#allocation3] sm:$0xff] %vm1777, %v1730
      %1779 = vst.msk [vmem:[#allocation3 + $0x8] sm:$0xff] %vm1777, %v1732
      %1780 = vst.msk [vmem:[#allocation3 + $0x10] sm:$0xff] %vm1777, %v1734
      %1781 = vst.msk [vmem:[#allocation3 + $0x18] sm:$0xff] %vm1777, %v1736
      %1782 = vst.msk [vmem:[#allocation3 + $0x20] sm:$0xff] %vm1777, %v1738
      %1783 = vst.msk [vmem:[#allocation3 + $0x28] sm:$0xff] %vm1777, %v1740
      %1784 = vst.msk [vmem:[#allocation3 + $0x30] sm:$0xff] %vm1777, %v1742
      %1785 = vst.msk [vmem:[#allocation3 + $0x38] sm:$0xff] %vm1777, %v1744
      %1786 = vst.msk [vmem:[#allocation3 + $0x40] sm:$0xff] %vm1777, %v1746
      %1787 = vst.msk [vmem:[#allocation3 + $0x48] sm:$0xff] %vm1777, %v1748
      %1788 = vst.msk [vmem:[#allocation3 + $0x50] sm:$0xff] %vm1777, %v1750
      %1789 = vst.msk [vmem:[#allocation3 + $0x58] sm:$0xff] %vm1777, %v1752
      %1790 = vst.msk [vmem:[#allocation3 + $0x60] sm:$0xff] %vm1777, %v1754
      %1791 = vst.msk [vmem:[#allocation3 + $0x68] sm:$0xff] %vm1777, %v1756
      %1792 = vst.msk [vmem:[#allocation3 + $0x70] sm:$0xff] %vm1777, %v1758
      %1793 = vst.msk [vmem:[#allocation3 + $0x78] sm:$0xff] %vm1777, %v1760
      %v1794 = vld [vmem:[%s1535 + $0x2] sm:$0xff]
      %v1795 = vld [vmem:[%s1535 + $0xa] sm:$0xff]
      %v1796 = vld [vmem:[%s1535 + $0x1a] sm:$0xff]
      %v1797 = vld [vmem:[%s1535 + $0x22] sm:$0xff]
      %v1798 = vld [vmem:[%s1535 + $0x32] sm:$0xff]
      %v1799 = vld [vmem:[%s1535 + $0x3a] sm:$0xff]
      %v1800 = vld [vmem:[%s1535 + $0x4a] sm:$0xff]
      %v1801 = vld [vmem:[%s1535 + $0x52] sm:$0xff]
      %v1802 = vld [vmem:[%s1535 + $0x62] sm:$0xff]
      %v1803 = vld [vmem:[%s1535 + $0x6a] sm:$0xff]
      %v1804 = vld [vmem:[%s1535 + $0x7a] sm:$0xff]
      %v1805 = vld [vmem:[%s1535 + $0x82] sm:$0xff]
      %v1806 = vld [vmem:[%s1535 + $0x92] sm:$0xff]
      %v1807 = vld [vmem:[%s1535 + $0x9a] sm:$0xff]
      %v1808 = vld [vmem:[%s1535 + $0xaa] sm:$0xff]
      %v1809 = vld [vmem:[%s1535 + $0xb2] sm:$0xff]
      %v1810 = vld [vmem:[%s1535 + $0xc2] sm:$0xff]
      %v1811 = vld [vmem:[%s1535 + $0xca] sm:$0xff]
      %v1812 = vld [vmem:[%s1535 + $0xda] sm:$0xff]
      %v1813 = vld [vmem:[%s1535 + $0xe2] sm:$0xff]
      %v1814 = vld [vmem:[%s1535 + $0xf2] sm:$0xff]
      %v1815 = vld [vmem:[%s1535 + $0xfa] sm:$0xff]
      %v1816 = vld [vmem:[%s1535 + $0x10a] sm:$0xff]
      %v1817 = vld [vmem:[%s1535 + $0x112] sm:$0xff]
      %v1818 = vld [vmem:[%s1535 + $0x122] sm:$0xff]
      %v1819 = vld [vmem:[%s1535 + $0x12a] sm:$0xff]
      %v1820 = vld [vmem:[%s1535 + $0x13a] sm:$0xff]
      %v1821 = vld [vmem:[%s1535 + $0x142] sm:$0xff]
      %v1822 = vld [vmem:[%s1535 + $0x152] sm:$0xff]
      %v1823 = vld [vmem:[%s1535 + $0x15a] sm:$0xff]
      %v1824 = vld [vmem:[%s1535 + $0x16a] sm:$0xff]
      %v1825 = vld [vmem:[%s1535 + $0x172] sm:$0xff]
      %v1826 = vpack.c.bf16 %v1795, %v1794
      %v1827 = vpack.c.bf16 %v1797, %v1796
      %v1828 = vpack.c.bf16 %v1799, %v1798
      %v1829 = vpack.c.bf16 %v1801, %v1800
      %v1830 = vpack.c.bf16 %v1803, %v1802
      %v1831 = vpack.c.bf16 %v1805, %v1804
      %v1832 = vpack.c.bf16 %v1807, %v1806
      %v1833 = vpack.c.bf16 %v1809, %v1808
      %v1834 = vpack.c.bf16 %v1811, %v1810
      %v1835 = vpack.c.bf16 %v1813, %v1812
      %v1836 = vpack.c.bf16 %v1815, %v1814
      %v1837 = vpack.c.bf16 %v1817, %v1816
      %v1838 = vpack.c.bf16 %v1819, %v1818
      %v1839 = vpack.c.bf16 %v1821, %v1820
      %v1840 = vpack.c.bf16 %v1823, %v1822
      %v1841 = vpack.c.bf16 %v1825, %v1824
      %1858 = vrot.lane.b32.xlu0 %v1826, 32
      %v1859 = vpop.permute.xlu0 %1858
      %1860 = vrot.lane.b32.xlu0 %v1827, 32
      %v1861 = vpop.permute.xlu0 %1860
      %1862 = vrot.lane.b32.xlu0 %v1828, 32
      %v1863 = vpop.permute.xlu0 %1862
      %1864 = vrot.lane.b32.xlu0 %v1829, 32
      %v1865 = vpop.permute.xlu0 %1864
      %1866 = vrot.lane.b32.xlu0 %v1830, 32
      %v1867 = vpop.permute.xlu0 %1866
      %1868 = vrot.lane.b32.xlu0 %v1831, 32
      %v1869 = vpop.permute.xlu0 %1868
      %1870 = vrot.lane.b32.xlu0 %v1832, 32
      %v1871 = vpop.permute.xlu0 %1870
      %1872 = vrot.lane.b32.xlu0 %v1833, 32
      %v1873 = vpop.permute.xlu0 %1872
      %1874 = vrot.lane.b32.xlu0 %v1834, 32
      %v1875 = vpop.permute.xlu0 %1874
      %1876 = vrot.lane.b32.xlu0 %v1835, 32
      %v1877 = vpop.permute.xlu0 %1876
      %1878 = vrot.lane.b32.xlu0 %v1836, 32
      %v1879 = vpop.permute.xlu0 %1878
      %1880 = vrot.lane.b32.xlu0 %v1837, 32
      %v1881 = vpop.permute.xlu0 %1880
      %1882 = vrot.lane.b32.xlu0 %v1838, 32
      %v1883 = vpop.permute.xlu0 %1882
      %1884 = vrot.lane.b32.xlu0 %v1839, 32
      %v1885 = vpop.permute.xlu0 %1884
      %1886 = vrot.lane.b32.xlu0 %v1840, 32
      %v1887 = vpop.permute.xlu0 %1886
      %1888 = vrot.lane.b32.xlu0 %v1841, 32
      %v1889 = vpop.permute.xlu0 %1888
      %vm1906 = vcmask 294144
      %1907 = vst.msk [vmem:[#allocation3] sm:$0xff] %vm1906, %v1859
      %1908 = vst.msk [vmem:[#allocation3 + $0x8] sm:$0xff] %vm1906, %v1861
      %1909 = vst.msk [vmem:[#allocation3 + $0x10] sm:$0xff] %vm1906, %v1863
      %1910 = vst.msk [vmem:[#allocation3 + $0x18] sm:$0xff] %vm1906, %v1865
      %1911 = vst.msk [vmem:[#allocation3 + $0x20] sm:$0xff] %vm1906, %v1867
      %1912 = vst.msk [vmem:[#allocation3 + $0x28] sm:$0xff] %vm1906, %v1869
      %1913 = vst.msk [vmem:[#allocation3 + $0x30] sm:$0xff] %vm1906, %v1871
      %1914 = vst.msk [vmem:[#allocation3 + $0x38] sm:$0xff] %vm1906, %v1873
      %1915 = vst.msk [vmem:[#allocation3 + $0x40] sm:$0xff] %vm1906, %v1875
      %1916 = vst.msk [vmem:[#allocation3 + $0x48] sm:$0xff] %vm1906, %v1877
      %1917 = vst.msk [vmem:[#allocation3 + $0x50] sm:$0xff] %vm1906, %v1879
      %1918 = vst.msk [vmem:[#allocation3 + $0x58] sm:$0xff] %vm1906, %v1881
      %1919 = vst.msk [vmem:[#allocation3 + $0x60] sm:$0xff] %vm1906, %v1883
      %1920 = vst.msk [vmem:[#allocation3 + $0x68] sm:$0xff] %vm1906, %v1885
      %1921 = vst.msk [vmem:[#allocation3 + $0x70] sm:$0xff] %vm1906, %v1887
      %1922 = vst.msk [vmem:[#allocation3 + $0x78] sm:$0xff] %vm1906, %v1889
      %v1923 = vld [vmem:[#allocation3] sm:$0xff]
      %v1924 = vld [vmem:[#allocation3 + $0x8] sm:$0xff]
      %v1925 = vld [vmem:[#allocation3 + $0x10] sm:$0xff]
      %v1926 = vld [vmem:[#allocation3 + $0x18] sm:$0xff]
      %v1927 = vld [vmem:[#allocation3 + $0x20] sm:$0xff]
      %v1928 = vld [vmem:[#allocation3 + $0x28] sm:$0xff]
      %v1929 = vld [vmem:[#allocation3 + $0x30] sm:$0xff]
      %v1930 = vld [vmem:[#allocation3 + $0x38] sm:$0xff]
      %v1931 = vld [vmem:[#allocation3 + $0x40] sm:$0xff]
      %v1932 = vld [vmem:[#allocation3 + $0x48] sm:$0xff]
      %v1933 = vld [vmem:[#allocation3 + $0x50] sm:$0xff]
      %v1934 = vld [vmem:[#allocation3 + $0x58] sm:$0xff]
      %v1935 = vld [vmem:[#allocation3 + $0x60] sm:$0xff]
      %v1936 = vld [vmem:[#allocation3 + $0x68] sm:$0xff]
      %v1937 = vld [vmem:[#allocation3 + $0x70] sm:$0xff]
      %v1938 = vld [vmem:[#allocation3 + $0x78] sm:$0xff]
      %v1939 = vld [vmem:[%s2] sm:$0xf]
      %v1940 = vld [vmem:[%s2 + $0x4] sm:$0xf]
      %v1941 = vld [vmem:[%s2 + $0x8] sm:$0xf]
      %v1942 = vld [vmem:[%s2 + $0xc] sm:$0xf]
      %v1943 = vld [vmem:[%s2 + $0x10] sm:$0x3]
      %v1949 = vunpack.c.l.b16 %v1939
      %v1950 = vunpack.c.l.b16 %v1940
      %v1951 = vunpack.c.l.b16 %v1941
      %v1952 = vunpack.c.l.b16 %v1942
      %v1953 = vunpack.c.l.b16 %v1943
      %v1954 = vpack.c.b16 %v1950, %v1949
      %v1955 = vpack.c.b16 %v1952, %v1951
      %v1956 = vpack.c.b16 %v1953, %v1953
      %vm1959 = vcmask 293888
      %v1961 = vsel %vm1959, %v1923, 0
      %v1964 = vsel %vm1959, %v1924, 0
      %v1967 = vsel %vm1959, %v1925, 0
      %v1970 = vsel %vm1959, %v1926, 0
      %v1973 = vsel %vm1959, %v1927, 0
      %v1976 = vsel %vm1959, %v1928, 0
      %v1979 = vsel %vm1959, %v1929, 0
      %v1982 = vsel %vm1959, %v1930, 0
      %v1985 = vsel %vm1959, %v1931, 0
      %v1988 = vsel %vm1959, %v1932, 0
      %v1991 = vsel %vm1959, %v1933, 0
      %v1994 = vsel %vm1959, %v1934, 0
      %v1997 = vsel %vm1959, %v1935, 0
      %v2000 = vsel %vm1959, %v1936, 0
      %v2003 = vsel %vm1959, %v1937, 0
      %v2006 = vsel %vm1959, %v1938, 0
      %vm2008 = vcmask 1041408
      %v2010 = vsel %vm2008, %v1956, 0
      %2012 = vmatprep.subr.bf16.mxu0 0
      %2013 = vmatpush1.bf16.msra.mxu0 %v1954
      %2014 = vmatprep.subr.bf16.mxu0 0
      %2015 = vmatpush1.bf16.msra.mxu0 %v1955
      %2016 = vmatprep.subr.bf16.mxu0 0
      %2017 = vmatpush1.bf16.msra.mxu0 %v2010
      %2018 = vmatprep.subr.bf16.mxu0 0
      %2019 = vmatpush1.bf16.msra.mxu0 0
      %2020 = vmatprep.subr.bf16.mxu0 0
      %2021 = vmatpush1.bf16.msra.mxu0 0
      %2022 = vmatprep.subr.bf16.mxu0 0
      %2023 = vmatpush1.bf16.msra.mxu0 0
      %2024 = vmatprep.subr.bf16.mxu0 0
      %2025 = vmatpush1.bf16.msra.mxu0 0
      %2026 = vmatprep.subr.bf16.mxu0 0
      %2027 = vmatpush1.bf16.msra.mxu0 0
      %2028 = vmatprep.subr.bf16.mxu0 0
      %2029 = vmatpush1.bf16.msra.mxu0 0
      %2030 = vmatprep.subr.bf16.mxu0 0
      %2031 = vmatpush1.bf16.msra.mxu0 0
      %2032 = vmatprep.subr.bf16.mxu0 0
      %2033 = vmatpush1.bf16.msra.mxu0 0
      %2034 = vmatprep.subr.bf16.mxu0 0
      %2035 = vmatpush1.bf16.msra.mxu0 0
      %2036 = vmatprep.subr.bf16.mxu0 0
      %2037 = vmatpush1.bf16.msra.mxu0 0
      %2038 = vmatprep.subr.bf16.mxu0 0
      %2039 = vmatpush1.bf16.msra.mxu0 0
      %2040 = vmatprep.subr.bf16.mxu0 0
      %2041 = vmatpush1.bf16.msra.mxu0 0
      %2042 = vmatprep.subr.bf16.mxu0 0
      %2043 = vmatpush1.bf16.msra.mxu0 0
      %2044 = vmatprep.mubr.bf16.mxu0 0
      %2045 = vmatmul.mubr.bf16.gmra.mrb[0].mxu0 %v1961
      %v2046 = vpop.f32.mrb[0].mxu0
      %v2047 = vadd.f32 0.0, %v2046
      %v2048 = vpop.f32.mrb[0].mxu0
      %v2049 = vpop.f32.mrb[0].mxu0
      %v2050 = vadd.f32 0.0, %v2049
      %v2051 = vpop.f32.mrb[0].mxu0
      %2052 = vmatprep.mubr.bf16.mxu0 0
      %2053 = vmatmul.mubr.bf16.gmra.mrb[0].mxu0 %v1964
      %v2054 = vpop.f32.mrb[0].mxu0
      %v2055 = vadd.f32 0.0, %v2054
      %v2056 = vpop.f32.mrb[0].mxu0
      %v2057 = vpop.f32.mrb[0].mxu0
      %v2058 = vadd.f32 0.0, %v2057
      %v2059 = vpop.f32.mrb[0].mxu0
      %2060 = vmatprep.mubr.bf16.mxu0 0
      %2061 = vmatmul.mubr.bf16.gmra.mrb[0].mxu0 %v1967
      %v2062 = vpop.f32.mrb[0].mxu0
      %v2063 = vadd.f32 0.0, %v2062
      %v2064 = vpop.f32.mrb[0].mxu0
      %v2065 = vpop.f32.mrb[0].mxu0
      %v2066 = vadd.f32 0.0, %v2065
      %v2067 = vpop.f32.mrb[0].mxu0
      %2068 = vmatprep.mubr.bf16.mxu0 0
      %2069 = vmatmul.mubr.bf16.gmra.mrb[0].mxu0 %v1970
      %v2070 = vpop.f32.mrb[0].mxu0
      %v2071 = vadd.f32 0.0, %v2070
      %v2072 = vpop.f32.mrb[0].mxu0
      %v2073 = vpop.f32.mrb[0].mxu0
      %v2074 = vadd.f32 0.0, %v2073
      %v2075 = vpop.f32.mrb[0].mxu0
      %2076 = vmatprep.mubr.bf16.mxu0 0
      %2077 = vmatmul.mubr.bf16.gmra.mrb[0].mxu0 %v1973
      %v2078 = vpop.f32.mrb[0].mxu0
      %v2079 = vadd.f32 0.0, %v2078
      %v2080 = vpop.f32.mrb[0].mxu0
      %v2081 = vpop.f32.mrb[0].mxu0
      %v2082 = vadd.f32 0.0, %v2081
      %v2083 = vpop.f32.mrb[0].mxu0
      %2084 = vmatprep.mubr.bf16.mxu0 0
      %2085 = vmatmul.mubr.bf16.gmra.mrb[0].mxu0 %v1976
      %v2086 = vpop.f32.mrb[0].mxu0
      %v2087 = vadd.f32 0.0, %v2086
      %v2088 = vpop.f32.mrb[0].mxu0
      %v2089 = vpop.f32.mrb[0].mxu0
      %v2090 = vadd.f32 0.0, %v2089
      %v2091 = vpop.f32.mrb[0].mxu0
      %2092 = vmatprep.mubr.bf16.mxu0 0
      %2093 = vmatmul.mubr.bf16.gmra.mrb[0].mxu0 %v1979
      %v2094 = vpop.f32.mrb[0].mxu0
      %v2095 = vadd.f32 0.0, %v2094
      %v2096 = vpop.f32.mrb[0].mxu0
      %v2097 = vpop.f32.mrb[0].mxu0
      %v2098 = vadd.f32 0.0, %v2097
      %v2099 = vpop.f32.mrb[0].mxu0
      %2100 = vmatprep.mubr.bf16.mxu0 0
      %2101 = vmatmul.mubr.bf16.gmra.mrb[0].mxu0 %v1982
      %v2102 = vpop.f32.mrb[0].mxu0
      %v2103 = vadd.f32 0.0, %v2102
      %v2104 = vpop.f32.mrb[0].mxu0
      %v2105 = vpop.f32.mrb[0].mxu0
      %v2106 = vadd.f32 0.0, %v2105
      %v2107 = vpop.f32.mrb[0].mxu0
      %2108 = vmatprep.mubr.bf16.mxu0 0
      %2109 = vmatmul.mubr.bf16.gmra.mrb[0].mxu0 %v1985
      %v2110 = vpop.f32.mrb[0].mxu0
      %v2111 = vadd.f32 0.0, %v2110
      %v2112 = vpop.f32.mrb[0].mxu0
      %v2113 = vpop.f32.mrb[0].mxu0
      %v2114 = vadd.f32 0.0, %v2113
      %v2115 = vpop.f32.mrb[0].mxu0
      %2116 = vmatprep.mubr.bf16.mxu0 0
      %2117 = vmatmul.mubr.bf16.gmra.mrb[0].mxu0 %v1988
      %v2118 = vpop.f32.mrb[0].mxu0
      %v2119 = vadd.f32 0.0, %v2118
      %v2120 = vpop.f32.mrb[0].mxu0
      %v2121 = vpop.f32.mrb[0].mxu0
      %v2122 = vadd.f32 0.0, %v2121
      %v2123 = vpop.f32.mrb[0].mxu0
      %2124 = vmatprep.mubr.bf16.mxu0 0
      %2125 = vmatmul.mubr.bf16.gmra.mrb[0].mxu0 %v1991
      %v2126 = vpop.f32.mrb[0].mxu0
      %v2127 = vadd.f32 0.0, %v2126
      %v2128 = vpop.f32.mrb[0].mxu0
      %v2129 = vpop.f32.mrb[0].mxu0
      %v2130 = vadd.f32 0.0, %v2129
      %v2131 = vpop.f32.mrb[0].mxu0
      %2132 = vmatprep.mubr.bf16.mxu0 0
      %2133 = vmatmul.mubr.bf16.gmra.mrb[0].mxu0 %v1994
      %v2134 = vpop.f32.mrb[0].mxu0
      %v2135 = vadd.f32 0.0, %v2134
      %v2136 = vpop.f32.mrb[0].mxu0
      %v2137 = vpop.f32.mrb[0].mxu0
      %v2138 = vadd.f32 0.0, %v2137
      %v2139 = vpop.f32.mrb[0].mxu0
      %2140 = vmatprep.mubr.bf16.mxu0 0
      %2141 = vmatmul.mubr.bf16.gmra.mrb[0].mxu0 %v1997
      %v2142 = vpop.f32.mrb[0].mxu0
      %v2143 = vadd.f32 0.0, %v2142
      %v2144 = vpop.f32.mrb[0].mxu0
      %v2145 = vpop.f32.mrb[0].mxu0
      %v2146 = vadd.f32 0.0, %v2145
      %v2147 = vpop.f32.mrb[0].mxu0
      %2148 = vmatprep.mubr.bf16.mxu0 0
      %2149 = vmatmul.mubr.bf16.gmra.mrb[0].mxu0 %v2000
      %v2150 = vpop.f32.mrb[0].mxu0
      %v2151 = vadd.f32 0.0, %v2150
      %v2152 = vpop.f32.mrb[0].mxu0
      %v2153 = vpop.f32.mrb[0].mxu0
      %v2154 = vadd.f32 0.0, %v2153
      %v2155 = vpop.f32.mrb[0].mxu0
      %2156 = vmatprep.mubr.bf16.mxu0 0
      %2157 = vmatmul.mubr.bf16.gmra.mrb[0].mxu0 %v2003
      %v2158 = vpop.f32.mrb[0].mxu0
      %v2159 = vadd.f32 0.0, %v2158
      %v2160 = vpop.f32.mrb[0].mxu0
      %v2161 = vpop.f32.mrb[0].mxu0
      %v2162 = vadd.f32 0.0, %v2161
      %v2163 = vpop.f32.mrb[0].mxu0
      %2164 = vmatprep.mubr.bf16.mxu0 0
      %2165 = vmatmul.mubr.bf16.gmra.mrb[0].mxu0 %v2006
      %v2166 = vpop.f32.mrb[0].mxu0
      %v2167 = vadd.f32 0.0, %v2166
      %v2168 = vpop.f32.mrb[0].mxu0
      %v2169 = vpop.f32.mrb[0].mxu0
      %v2170 = vadd.f32 0.0, %v2169
      %v2171 = vpop.f32.mrb[0].mxu0
      %2172 = vdwg.mxu0
      %v2173 = vld [vmem:[%s6] sm:$0x1]
      %v2175 = vlaneseq
      %v2176 = vshrl.u32 %v2175, 7
      %v2177 = vsub.s32 0, %v2176
      %v2178 = vrot.slane %v2173, %v2177
      %v2180 = vmul.f32 %v2047, %v2178
      %v2181 = vmul.f32 %v2050, %v2178
      %v2182 = vmul.f32 %v2055, %v2178
      %v2183 = vmul.f32 %v2058, %v2178
      %v2184 = vmul.f32 %v2063, %v2178
      %v2185 = vmul.f32 %v2066, %v2178
      %v2186 = vmul.f32 %v2071, %v2178
      %v2187 = vmul.f32 %v2074, %v2178
      %v2188 = vmul.f32 %v2079, %v2178
      %v2189 = vmul.f32 %v2082, %v2178
      %v2190 = vmul.f32 %v2087, %v2178
      %v2191 = vmul.f32 %v2090, %v2178
      %v2192 = vmul.f32 %v2095, %v2178
      %v2193 = vmul.f32 %v2098, %v2178
      %v2194 = vmul.f32 %v2103, %v2178
      %v2195 = vmul.f32 %v2106, %v2178
      %v2196 = vmul.f32 %v2111, %v2178
      %v2197 = vmul.f32 %v2114, %v2178
      %v2198 = vmul.f32 %v2119, %v2178
      %v2199 = vmul.f32 %v2122, %v2178
      %v2200 = vmul.f32 %v2127, %v2178
      %v2201 = vmul.f32 %v2130, %v2178
      %v2202 = vmul.f32 %v2135, %v2178
      %v2203 = vmul.f32 %v2138, %v2178
      %v2204 = vmul.f32 %v2143, %v2178
      %v2205 = vmul.f32 %v2146, %v2178
      %v2206 = vmul.f32 %v2151, %v2178
      %v2207 = vmul.f32 %v2154, %v2178
      %v2208 = vmul.f32 %v2159, %v2178
      %v2209 = vmul.f32 %v2162, %v2178
      %v2210 = vmul.f32 %v2167, %v2178
      %v2211 = vmul.f32 %v2170, %v2178
      %v2212 = vld [vmem:[%s7] sm:$0x1]
      %v2214 = vlaneseq
      %v2215 = vshrl.u32 %v2214, 7
      %v2216 = vsub.s32 0, %v2215
      %v2217 = vrot.slane %v2212, %v2216
      %v2219 = vadd.f32 %v2180, %v2217
      %v2220 = vadd.f32 %v2181, %v2217
      %v2221 = vadd.f32 %v2182, %v2217
      %v2222 = vadd.f32 %v2183, %v2217
      %v2223 = vadd.f32 %v2184, %v2217
      %v2224 = vadd.f32 %v2185, %v2217
      %v2225 = vadd.f32 %v2186, %v2217
      %v2226 = vadd.f32 %v2187, %v2217
      %v2227 = vadd.f32 %v2188, %v2217
      %v2228 = vadd.f32 %v2189, %v2217
      %v2229 = vadd.f32 %v2190, %v2217
      %v2230 = vadd.f32 %v2191, %v2217
      %v2231 = vadd.f32 %v2192, %v2217
      %v2232 = vadd.f32 %v2193, %v2217
      %v2233 = vadd.f32 %v2194, %v2217
      %v2234 = vadd.f32 %v2195, %v2217
      %v2235 = vadd.f32 %v2196, %v2217
      %v2236 = vadd.f32 %v2197, %v2217
      %v2237 = vadd.f32 %v2198, %v2217
      %v2238 = vadd.f32 %v2199, %v2217
      %v2239 = vadd.f32 %v2200, %v2217
      %v2240 = vadd.f32 %v2201, %v2217
      %v2241 = vadd.f32 %v2202, %v2217
      %v2242 = vadd.f32 %v2203, %v2217
      %v2243 = vadd.f32 %v2204, %v2217
      %v2244 = vadd.f32 %v2205, %v2217
      %v2245 = vadd.f32 %v2206, %v2217
      %v2246 = vadd.f32 %v2207, %v2217
      %v2247 = vadd.f32 %v2208, %v2217
      %v2248 = vadd.f32 %v2209, %v2217
      %v2249 = vadd.f32 %v2210, %v2217
      %v2250 = vadd.f32 %v2211, %v2217
      %v2251 = vmax.f32 %v2219, 0.0
      %v2252 = vmax.f32 %v2220, 0.0
      %v2253 = vmax.f32 %v2221, 0.0
      %v2254 = vmax.f32 %v2222, 0.0
      %v2255 = vmax.f32 %v2223, 0.0
      %v2256 = vmax.f32 %v2224, 0.0
      %v2257 = vmax.f32 %v2225, 0.0
      %v2258 = vmax.f32 %v2226, 0.0
      %v2259 = vmax.f32 %v2227, 0.0
      %v2260 = vmax.f32 %v2228, 0.0
      %v2261 = vmax.f32 %v2229, 0.0
      %v2262 = vmax.f32 %v2230, 0.0
      %v2263 = vmax.f32 %v2231, 0.0
      %v2264 = vmax.f32 %v2232, 0.0
      %v2265 = vmax.f32 %v2233, 0.0
      %v2266 = vmax.f32 %v2234, 0.0
      %v2267 = vmax.f32 %v2235, 0.0
      %v2268 = vmax.f32 %v2236, 0.0
      %v2269 = vmax.f32 %v2237, 0.0
      %v2270 = vmax.f32 %v2238, 0.0
      %v2271 = vmax.f32 %v2239, 0.0
      %v2272 = vmax.f32 %v2240, 0.0
      %v2273 = vmax.f32 %v2241, 0.0
      %v2274 = vmax.f32 %v2242, 0.0
      %v2275 = vmax.f32 %v2243, 0.0
      %v2276 = vmax.f32 %v2244, 0.0
      %v2277 = vmax.f32 %v2245, 0.0
      %v2278 = vmax.f32 %v2246, 0.0
      %v2279 = vmax.f32 %v2247, 0.0
      %v2280 = vmax.f32 %v2248, 0.0
      %v2281 = vmax.f32 %v2249, 0.0
      %v2282 = vmax.f32 %v2250, 0.0
      %v2283 = vpack.c.bf16 %v2252, %v2251
      %v2284 = vpack.c.bf16 %v2254, %v2253
      %v2285 = vpack.c.bf16 %v2256, %v2255
      %v2286 = vpack.c.bf16 %v2258, %v2257
      %v2287 = vpack.c.bf16 %v2260, %v2259
      %v2288 = vpack.c.bf16 %v2262, %v2261
      %v2289 = vpack.c.bf16 %v2264, %v2263
      %v2290 = vpack.c.bf16 %v2266, %v2265
      %v2291 = vpack.c.bf16 %v2268, %v2267
      %v2292 = vpack.c.bf16 %v2270, %v2269
      %v2293 = vpack.c.bf16 %v2272, %v2271
      %v2294 = vpack.c.bf16 %v2274, %v2273
      %v2295 = vpack.c.bf16 %v2276, %v2275
      %v2296 = vpack.c.bf16 %v2278, %v2277
      %v2297 = vpack.c.bf16 %v2280, %v2279
      %v2298 = vpack.c.bf16 %v2282, %v2281
      %v2299 = vld [vmem:[%s3] sm:$0x3]
      %v2301 = vsel %vm737, %v2283, 0
      %v2304 = vsel %vm737, %v2284, 0
      %v2307 = vsel %vm737, %v2285, 0
      %v2310 = vsel %vm737, %v2286, 0
      %v2313 = vsel %vm737, %v2287, 0
      %v2316 = vsel %vm737, %v2288, 0
      %v2319 = vsel %vm737, %v2289, 0
      %v2322 = vsel %vm737, %v2290, 0
      %v2325 = vsel %vm737, %v2291, 0
      %v2328 = vsel %vm737, %v2292, 0
      %v2331 = vsel %vm737, %v2293, 0
      %v2334 = vsel %vm737, %v2294, 0
      %v2337 = vsel %vm737, %v2295, 0
      %v2340 = vsel %vm737, %v2296, 0
      %v2343 = vsel %vm737, %v2297, 0
      %v2346 = vsel %vm737, %v2298, 0
      %v2349 = vsel %vm2008, %v2299, 0
      %2351 = vmatprep.subr.bf16.mxu0 0
      %2352 = vmatpush1.bf16.msra.mxu0 %v2349
      %2353 = vmatprep.subr.bf16.mxu0 0
      %2354 = vmatpush1.bf16.msra.mxu0 0
      %2355 = vmatprep.subr.bf16.mxu0 0
      %2356 = vmatpush1.bf16.msra.mxu0 0
      %2357 = vmatprep.subr.bf16.mxu0 0
      %2358 = vmatpush1.bf16.msra.mxu0 0
      %2359 = vmatprep.subr.bf16.mxu0 0
      %2360 = vmatpush1.bf16.msra.mxu0 0
      %2361 = vmatprep.subr.bf16.mxu0 0
      %2362 = vmatpush1.bf16.msra.mxu0 0
      %2363 = vmatprep.subr.bf16.mxu0 0
      %2364 = vmatpush1.bf16.msra.mxu0 0
      %2365 = vmatprep.subr.bf16.mxu0 0
      %2366 = vmatpush1.bf16.msra.mxu0 0
      %2367 = vmatprep.subr.bf16.mxu0 0
      %2368 = vmatpush1.bf16.msra.mxu0 0
      %2369 = vmatprep.subr.bf16.mxu0 0
      %2370 = vmatpush1.bf16.msra.mxu0 0
      %2371 = vmatprep.subr.bf16.mxu0 0
      %2372 = vmatpush1.bf16.msra.mxu0 0
      %2373 = vmatprep.subr.bf16.mxu0 0
      %2374 = vmatpush1.bf16.msra.mxu0 0
      %2375 = vmatprep.subr.bf16.mxu0 0
      %2376 = vmatpush1.bf16.msra.mxu0 0
      %2377 = vmatprep.subr.bf16.mxu0 0
      %2378 = vmatpush1.bf16.msra.mxu0 0
      %2379 = vmatprep.subr.bf16.mxu0 0
      %2380 = vmatpush1.bf16.msra.mxu0 0
      %2381 = vmatprep.subr.bf16.mxu0 0
      %2382 = vmatpush1.bf16.msra.mxu0 0
      %2383 = vmatprep.mubr.bf16.mxu0 0
      %2384 = vmatmul.mubr.bf16.gmra.mrb[0].mxu0 %v2301
      %v2385 = vpop.f32.mrb[0].mxu0
      %v2386 = vadd.f32 0.0, %v2385
      %v2387 = vpop.f32.mrb[0].mxu0
      %v2388 = vpop.f32.mrb[0].mxu0
      %v2389 = vadd.f32 0.0, %v2388
      %v2390 = vpop.f32.mrb[0].mxu0
      %2391 = vmatprep.mubr.bf16.mxu0 0
      %2392 = vmatmul.mubr.bf16.gmra.mrb[0].mxu0 %v2304
      %v2393 = vpop.f32.mrb[0].mxu0
      %v2394 = vadd.f32 0.0, %v2393
      %v2395 = vpop.f32.mrb[0].mxu0
      %v2396 = vpop.f32.mrb[0].mxu0
      %v2397 = vadd.f32 0.0, %v2396
      %v2398 = vpop.f32.mrb[0].mxu0
      %2399 = vmatprep.mubr.bf16.mxu0 0
      %2400 = vmatmul.mubr.bf16.gmra.mrb[0].mxu0 %v2307
      %v2401 = vpop.f32.mrb[0].mxu0
      %v2402 = vadd.f32 0.0, %v2401
      %v2403 = vpop.f32.mrb[0].mxu0
      %v2404 = vpop.f32.mrb[0].mxu0
      %v2405 = vadd.f32 0.0, %v2404
      %v2406 = vpop.f32.mrb[0].mxu0
      %2407 = vmatprep.mubr.bf16.mxu0 0
      %2408 = vmatmul.mubr.bf16.gmra.mrb[0].mxu0 %v2310
      %v2409 = vpop.f32.mrb[0].mxu0
      %v2410 = vadd.f32 0.0, %v2409
      %v2411 = vpop.f32.mrb[0].mxu0
      %v2412 = vpop.f32.mrb[0].mxu0
      %v2413 = vadd.f32 0.0, %v2412
      %v2414 = vpop.f32.mrb[0].mxu0
      %2415 = vmatprep.mubr.bf16.mxu0 0
      %2416 = vmatmul.mubr.bf16.gmra.mrb[0].mxu0 %v2313
      %v2417 = vpop.f32.mrb[0].mxu0
      %v2418 = vadd.f32 0.0, %v2417
      %v2419 = vpop.f32.mrb[0].mxu0
      %v2420 = vpop.f32.mrb[0].mxu0
      %v2421 = vadd.f32 0.0, %v2420
      %v2422 = vpop.f32.mrb[0].mxu0
      %2423 = vmatprep.mubr.bf16.mxu0 0
      %2424 = vmatmul.mubr.bf16.gmra.mrb[0].mxu0 %v2316
      %v2425 = vpop.f32.mrb[0].mxu0
      %v2426 = vadd.f32 0.0, %v2425
      %v2427 = vpop.f32.mrb[0].mxu0
      %v2428 = vpop.f32.mrb[0].mxu0
      %v2429 = vadd.f32 0.0, %v2428
      %v2430 = vpop.f32.mrb[0].mxu0
      %2431 = vmatprep.mubr.bf16.mxu0 0
      %2432 = vmatmul.mubr.bf16.gmra.mrb[0].mxu0 %v2319
      %v2433 = vpop.f32.mrb[0].mxu0
      %v2434 = vadd.f32 0.0, %v2433
      %v2435 = vpop.f32.mrb[0].mxu0
      %v2436 = vpop.f32.mrb[0].mxu0
      %v2437 = vadd.f32 0.0, %v2436
      %v2438 = vpop.f32.mrb[0].mxu0
      %2439 = vmatprep.mubr.bf16.mxu0 0
      %2440 = vmatmul.mubr.bf16.gmra.mrb[0].mxu0 %v2322
      %v2441 = vpop.f32.mrb[0].mxu0
      %v2442 = vadd.f32 0.0, %v2441
      %v2443 = vpop.f32.mrb[0].mxu0
      %v2444 = vpop.f32.mrb[0].mxu0
      %v2445 = vadd.f32 0.0, %v2444
      %v2446 = vpop.f32.mrb[0].mxu0
      %2447 = vmatprep.mubr.bf16.mxu0 0
      %2448 = vmatmul.mubr.bf16.gmra.mrb[0].mxu0 %v2325
      %v2449 = vpop.f32.mrb[0].mxu0
      %v2450 = vadd.f32 0.0, %v2449
      %v2451 = vpop.f32.mrb[0].mxu0
      %v2452 = vpop.f32.mrb[0].mxu0
      %v2453 = vadd.f32 0.0, %v2452
      %v2454 = vpop.f32.mrb[0].mxu0
      %2455 = vmatprep.mubr.bf16.mxu0 0
      %2456 = vmatmul.mubr.bf16.gmra.mrb[0].mxu0 %v2328
      %v2457 = vpop.f32.mrb[0].mxu0
      %v2458 = vadd.f32 0.0, %v2457
      %v2459 = vpop.f32.mrb[0].mxu0
      %v2460 = vpop.f32.mrb[0].mxu0
      %v2461 = vadd.f32 0.0, %v2460
      %v2462 = vpop.f32.mrb[0].mxu0
      %2463 = vmatprep.mubr.bf16.mxu0 0
      %2464 = vmatmul.mubr.bf16.gmra.mrb[0].mxu0 %v2331
      %v2465 = vpop.f32.mrb[0].mxu0
      %v2466 = vadd.f32 0.0, %v2465
      %v2467 = vpop.f32.mrb[0].mxu0
      %v2468 = vpop.f32.mrb[0].mxu0
      %v2469 = vadd.f32 0.0, %v2468
      %v2470 = vpop.f32.mrb[0].mxu0
      %2471 = vmatprep.mubr.bf16.mxu0 0
      %2472 = vmatmul.mubr.bf16.gmra.mrb[0].mxu0 %v2334
      %v2473 = vpop.f32.mrb[0].mxu0
      %v2474 = vadd.f32 0.0, %v2473
      %v2475 = vpop.f32.mrb[0].mxu0
      %v2476 = vpop.f32.mrb[0].mxu0
      %v2477 = vadd.f32 0.0, %v2476
      %v2478 = vpop.f32.mrb[0].mxu0
      %2479 = vmatprep.mubr.bf16.mxu0 0
      %2480 = vmatmul.mubr.bf16.gmra.mrb[0].mxu0 %v2337
      %v2481 = vpop.f32.mrb[0].mxu0
      %v2482 = vadd.f32 0.0, %v2481
      %v2483 = vpop.f32.mrb[0].mxu0
      %v2484 = vpop.f32.mrb[0].mxu0
      %v2485 = vadd.f32 0.0, %v2484
      %v2486 = vpop.f32.mrb[0].mxu0
      %2487 = vmatprep.mubr.bf16.mxu0 0
      %2488 = vmatmul.mubr.bf16.gmra.mrb[0].mxu0 %v2340
      %v2489 = vpop.f32.mrb[0].mxu0
      %v2490 = vadd.f32 0.0, %v2489
      %v2491 = vpop.f32.mrb[0].mxu0
      %v2492 = vpop.f32.mrb[0].mxu0
      %v2493 = vadd.f32 0.0, %v2492
      %v2494 = vpop.f32.mrb[0].mxu0
      %2495 = vmatprep.mubr.bf16.mxu0 0
      %2496 = vmatmul.mubr.bf16.gmra.mrb[0].mxu0 %v2343
      %v2497 = vpop.f32.mrb[0].mxu0
      %v2498 = vadd.f32 0.0, %v2497
      %v2499 = vpop.f32.mrb[0].mxu0
      %v2500 = vpop.f32.mrb[0].mxu0
      %v2501 = vadd.f32 0.0, %v2500
      %v2502 = vpop.f32.mrb[0].mxu0
      %2503 = vmatprep.mubr.bf16.mxu0 0
      %2504 = vmatmul.mubr.bf16.gmra.mrb[0].mxu0 %v2346
      %v2505 = vpop.f32.mrb[0].mxu0
      %v2506 = vadd.f32 0.0, %v2505
      %v2507 = vpop.f32.mrb[0].mxu0
      %v2508 = vpop.f32.mrb[0].mxu0
      %v2509 = vadd.f32 0.0, %v2508
      %v2510 = vpop.f32.mrb[0].mxu0
      %2511 = vdwg.mxu0
      %v2512 = vld [vmem:[%s8] sm:$0x1]
      %v2514 = vlaneseq
      %v2515 = vshrl.u32 %v2514, 7
      %v2516 = vsub.s32 0, %v2515
      %v2517 = vrot.slane %v2512, %v2516
      %v2519 = vmul.f32 %v2386, %v2517
      %v2520 = vmul.f32 %v2389, %v2517
      %v2521 = vmul.f32 %v2394, %v2517
      %v2522 = vmul.f32 %v2397, %v2517
      %v2523 = vmul.f32 %v2402, %v2517
      %v2524 = vmul.f32 %v2405, %v2517
      %v2525 = vmul.f32 %v2410, %v2517
      %v2526 = vmul.f32 %v2413, %v2517
      %v2527 = vmul.f32 %v2418, %v2517
      %v2528 = vmul.f32 %v2421, %v2517
      %v2529 = vmul.f32 %v2426, %v2517
      %v2530 = vmul.f32 %v2429, %v2517
      %v2531 = vmul.f32 %v2434, %v2517
      %v2532 = vmul.f32 %v2437, %v2517
      %v2533 = vmul.f32 %v2442, %v2517
      %v2534 = vmul.f32 %v2445, %v2517
      %v2535 = vmul.f32 %v2450, %v2517
      %v2536 = vmul.f32 %v2453, %v2517
      %v2537 = vmul.f32 %v2458, %v2517
      %v2538 = vmul.f32 %v2461, %v2517
      %v2539 = vmul.f32 %v2466, %v2517
      %v2540 = vmul.f32 %v2469, %v2517
      %v2541 = vmul.f32 %v2474, %v2517
      %v2542 = vmul.f32 %v2477, %v2517
      %v2543 = vmul.f32 %v2482, %v2517
      %v2544 = vmul.f32 %v2485, %v2517
      %v2545 = vmul.f32 %v2490, %v2517
      %v2546 = vmul.f32 %v2493, %v2517
      %v2547 = vmul.f32 %v2498, %v2517
      %v2548 = vmul.f32 %v2501, %v2517
      %v2549 = vmul.f32 %v2506, %v2517
      %v2550 = vmul.f32 %v2509, %v2517
      %v2551 = vld [vmem:[%s9] sm:$0x1]
      %v2553 = vlaneseq
      %v2554 = vshrl.u32 %v2553, 7
      %v2555 = vsub.s32 0, %v2554
      %v2556 = vrot.slane %v2551, %v2555
      %v2558 = vadd.f32 %v2519, %v2556
      %v2559 = vadd.f32 %v2520, %v2556
      %v2560 = vadd.f32 %v2521, %v2556
      %v2561 = vadd.f32 %v2522, %v2556
      %v2562 = vadd.f32 %v2523, %v2556
      %v2563 = vadd.f32 %v2524, %v2556
      %v2564 = vadd.f32 %v2525, %v2556
      %v2565 = vadd.f32 %v2526, %v2556
      %v2566 = vadd.f32 %v2527, %v2556
      %v2567 = vadd.f32 %v2528, %v2556
      %v2568 = vadd.f32 %v2529, %v2556
      %v2569 = vadd.f32 %v2530, %v2556
      %v2570 = vadd.f32 %v2531, %v2556
      %v2571 = vadd.f32 %v2532, %v2556
      %v2572 = vadd.f32 %v2533, %v2556
      %v2573 = vadd.f32 %v2534, %v2556
      %v2574 = vadd.f32 %v2535, %v2556
      %v2575 = vadd.f32 %v2536, %v2556
      %v2576 = vadd.f32 %v2537, %v2556
      %v2577 = vadd.f32 %v2538, %v2556
      %v2578 = vadd.f32 %v2539, %v2556
      %v2579 = vadd.f32 %v2540, %v2556
      %v2580 = vadd.f32 %v2541, %v2556
      %v2581 = vadd.f32 %v2542, %v2556
      %v2582 = vadd.f32 %v2543, %v2556
      %v2583 = vadd.f32 %v2544, %v2556
      %v2584 = vadd.f32 %v2545, %v2556
      %v2585 = vadd.f32 %v2546, %v2556
      %v2586 = vadd.f32 %v2547, %v2556
      %v2587 = vadd.f32 %v2548, %v2556
      %v2588 = vadd.f32 %v2549, %v2556
      %v2589 = vadd.f32 %v2550, %v2556
      %v2590 = vadd.f32 %v2558, %v361
      %v2591 = vadd.f32 %v2559, %v362
      %v2592 = vadd.f32 %v2560, %v363
      %v2593 = vadd.f32 %v2561, %v364
      %v2594 = vadd.f32 %v2562, %v365
      %v2595 = vadd.f32 %v2563, %v366
      %v2596 = vadd.f32 %v2564, %v367
      %v2597 = vadd.f32 %v2565, %v368
      %v2598 = vadd.f32 %v2566, %v369
      %v2599 = vadd.f32 %v2567, %v370
      %v2600 = vadd.f32 %v2568, %v371
      %v2601 = vadd.f32 %v2569, %v372
      %v2602 = vadd.f32 %v2570, %v373
      %v2603 = vadd.f32 %v2571, %v374
      %v2604 = vadd.f32 %v2572, %v375
      %v2605 = vadd.f32 %v2573, %v376
      %v2606 = vadd.f32 %v2574, %v377
      %v2607 = vadd.f32 %v2575, %v378
      %v2608 = vadd.f32 %v2576, %v379
      %v2609 = vadd.f32 %v2577, %v380
      %v2610 = vadd.f32 %v2578, %v381
      %v2611 = vadd.f32 %v2579, %v382
      %v2612 = vadd.f32 %v2580, %v383
      %v2613 = vadd.f32 %v2581, %v384
      %v2614 = vadd.f32 %v2582, %v385
      %v2615 = vadd.f32 %v2583, %v386
      %v2616 = vadd.f32 %v2584, %v387
      %v2617 = vadd.f32 %v2585, %v388
      %v2618 = vadd.f32 %v2586, %v389
      %v2619 = vadd.f32 %v2587, %v390
      %v2620 = vadd.f32 %v2588, %v391
      %v2621 = vadd.f32 %v2589, %v392
      %v2622 = vmax.f32 %v2590, 0.0
      %v2623 = vmax.f32 %v2591, 0.0
      %v2624 = vmax.f32 %v2592, 0.0
      %v2625 = vmax.f32 %v2593, 0.0
      %v2626 = vmax.f32 %v2594, 0.0
      %v2627 = vmax.f32 %v2595, 0.0
      %v2628 = vmax.f32 %v2596, 0.0
      %v2629 = vmax.f32 %v2597, 0.0
      %v2630 = vmax.f32 %v2598, 0.0
      %v2631 = vmax.f32 %v2599, 0.0
      %v2632 = vmax.f32 %v2600, 0.0
      %v2633 = vmax.f32 %v2601, 0.0
      %v2634 = vmax.f32 %v2602, 0.0
      %v2635 = vmax.f32 %v2603, 0.0
      %v2636 = vmax.f32 %v2604, 0.0
      %v2637 = vmax.f32 %v2605, 0.0
      %v2638 = vmax.f32 %v2606, 0.0
      %v2639 = vmax.f32 %v2607, 0.0
      %v2640 = vmax.f32 %v2608, 0.0
      %v2641 = vmax.f32 %v2609, 0.0
      %v2642 = vmax.f32 %v2610, 0.0
      %v2643 = vmax.f32 %v2611, 0.0
      %v2644 = vmax.f32 %v2612, 0.0
      %v2645 = vmax.f32 %v2613, 0.0
      %v2646 = vmax.f32 %v2614, 0.0
      %v2647 = vmax.f32 %v2615, 0.0
      %v2648 = vmax.f32 %v2616, 0.0
      %v2649 = vmax.f32 %v2617, 0.0
      %v2650 = vmax.f32 %v2618, 0.0
      %v2651 = vmax.f32 %v2619, 0.0
      %v2652 = vmax.f32 %v2620, 0.0
      %v2653 = vmax.f32 %v2621, 0.0
      %2654 = vst.msk [vmem:[%s359] sm:$0xff] %vm417, %v2622
      %2655 = vst.msk [vmem:[%s359 + $0x8] sm:$0xff] %vm417, %v2623
      %2656 = vst.msk [vmem:[%s359 + $0x10] sm:$0xff] %vm417, %v2624
      %2657 = vst.msk [vmem:[%s359 + $0x18] sm:$0xff] %vm417, %v2625
      %2658 = vst.msk [vmem:[%s359 + $0x20] sm:$0xff] %vm417, %v2626
      %2659 = vst.msk [vmem:[%s359 + $0x28] sm:$0xff] %vm417, %v2627
      %2660 = vst.msk [vmem:[%s359 + $0x30] sm:$0xff] %vm417, %v2628
      %2661 = vst.msk [vmem:[%s359 + $0x38] sm:$0xff] %vm417, %v2629
      %2662 = vst.msk [vmem:[%s359 + $0x40] sm:$0xff] %vm417, %v2630
      %2663 = vst.msk [vmem:[%s359 + $0x48] sm:$0xff] %vm417, %v2631
      %2664 = vst.msk [vmem:[%s359 + $0x50] sm:$0xff] %vm417, %v2632
      %2665 = vst.msk [vmem:[%s359 + $0x58] sm:$0xff] %vm417, %v2633
      %2666 = vst.msk [vmem:[%s359 + $0x60] sm:$0xff] %vm417, %v2634
      %2667 = vst.msk [vmem:[%s359 + $0x68] sm:$0xff] %vm417, %v2635
      %2668 = vst.msk [vmem:[%s359 + $0x70] sm:$0xff] %vm417, %v2636
      %2669 = vst.msk [vmem:[%s359 + $0x78] sm:$0xff] %vm417, %v2637
      %2670 = vst.msk [vmem:[%s359 + $0x80] sm:$0xff] %vm417, %v2638
      %2671 = vst.msk [vmem:[%s359 + $0x88] sm:$0xff] %vm417, %v2639
      %2672 = vst.msk [vmem:[%s359 + $0x90] sm:$0xff] %vm417, %v2640
      %2673 = vst.msk [vmem:[%s359 + $0x98] sm:$0xff] %vm417, %v2641
      %2674 = vst.msk [vmem:[%s359 + $0xa0] sm:$0xff] %vm417, %v2642
      %2675 = vst.msk [vmem:[%s359 + $0xa8] sm:$0xff] %vm417, %v2643
      %2676 = vst.msk [vmem:[%s359 + $0xb0] sm:$0xff] %vm417, %v2644
      %2677 = vst.msk [vmem:[%s359 + $0xb8] sm:$0xff] %vm417, %v2645
      %2678 = vst.msk [vmem:[%s359 + $0xc0] sm:$0xff] %vm417, %v2646
      %2679 = vst.msk [vmem:[%s359 + $0xc8] sm:$0xff] %vm417, %v2647
      %2680 = vst.msk [vmem:[%s359 + $0xd0] sm:$0xff] %vm417, %v2648
      %2681 = vst.msk [vmem:[%s359 + $0xd8] sm:$0xff] %vm417, %v2649
      %2682 = vst.msk [vmem:[%s359 + $0xe0] sm:$0xff] %vm417, %v2650
      %2683 = vst.msk [vmem:[%s359 + $0xe8] sm:$0xff] %vm417, %v2651
      %2684 = vst.msk [vmem:[%s359 + $0xf0] sm:$0xff] %vm417, %v2652
      %2685 = vst.msk [vmem:[%s359 + $0xf8] sm:$0xff] %vm417, %v2653
      %p2686 = scmp.lt.s32.totalorder %s21, 1
      %s2687 = scalar_select %p2686, %s21, 1
      %s2688 = smul.addr %s2687, 32
      %s2689 = smul.addr %s2688, 8
      %s2690 = scalar_lea.vmem %s10, %s2689
      // Predicated region
      $region61: #{bottleneck_forward.1} parent=59 // pred_check
        %p2691 = pneg %p254
      $region62: #{bottleneck_forward.1} parent=59 // pred_check_branch
        %2693 = sbr.rel (%p2691) target = $region64
      $region63: #{bottleneck_forward.1} parent=59 // pred_region
        _
      $region64: #{bottleneck_forward.1} parent=59 // pred_fallthru
        _
    $region60: #{bottleneck_forward.1} parent=5 // pred_fallthru
      _
    %p2694 = scmp.le.s32.totalorder 2, %s16
    // Predicated region
    $region65: #{bottleneck_forward.1} parent=5 // pred_check
      %p2695 = pneg %p2694
    $region66: #{bottleneck_forward.1} parent=5 // pred_check_branch
      %2697 = sbr.rel (%p2695) target = $region68
    $region67: #{bottleneck_forward.1} parent=5 // pred_region
      %s2698 = ssub.s32 %s16, 2
      // Predicated region
      $region69: #{bottleneck_forward.1} parent=67 // pred_check
        %p2699 = pneg %p260
      $region70: #{bottleneck_forward.1} parent=67 // pred_check_branch
        %2701 = sbr.rel (%p2699) target = $region72
      $region71: #{bottleneck_forward.1} parent=67 // pred_region
        %p2702 = scmp.lt.s32.totalorder %s22, 1
        %s2703 = scalar_select %p2702, %s22, 1
        %s2704 = smul.addr %s2703, 32
        %s2705 = smul.addr %s2704, 8
        %s2706 = scalar_lea.vmem %s10, %s2705
      $region72: #{bottleneck_forward.1} parent=67 // pred_fallthru
        _
    $region68: #{bottleneck_forward.1} parent=5 // pred_fallthru
      _
  $region6: #{bottleneck_forward.1} parent=0 // loop_footer
    %s20 = sadd.s32 1, %s16
  $region7: #{bottleneck_forward.1} parent=0 // loop_footer_branch
    %15 = sbr.rel target = $region3
  $region8: #{bottleneck_forward.1} parent=0 // loop_exit
    _

</llo_original>
